<compile_context>
chip_gen: v5e
topology: v5e:2x2
jax: 0.10.0
libtpu: 0.0.40
codegen_flags: <defaults>
</compile_context>

<pallas_src>
import functools

import jax
import jax.numpy as jnp
from jax.experimental import pallas as pl
from jax.experimental.pallas import tpu as pltpu

EPS = 1e-5
BF16 = jnp.bfloat16


# ---------------------------------------------------------------------------
# Kernel
# ---------------------------------------------------------------------------
def _bn_train_masked(x, mask, inv_n, gamma=None, beta=None):
    """BatchNorm1d (training mode) over the valid rows only.

    x: [M, C] f32, mask: [M, 1] f32 (1.0 on valid rows), inv_n: f32 scalar 1/n_valid.
    Masked rows contribute exactly 0 to the sums, so the stats equal the unpadded ones.
    """
    xm = x * mask
    mu = jnp.sum(xm, axis=0, keepdims=True) * inv_n
    d = (x - mu) * mask
    var = jnp.sum(d * d, axis=0, keepdims=True) * inv_n
    xn = (x - mu) * jax.lax.rsqrt(var + EPS)
    if gamma is not None:
        xn = xn * gamma + beta
    return xn


def simclr_kernel(count_ref,                       # scalar prefetch: [n_img] i32 (SMEM)
                  s_ref, o_ref,                    # [M, P] f32 (current image, padded)
                  ws_ref, bs_ref, wo_ref, bo_ref,  # sub/obj embeddings
                  w1s_ref, w1o_ref, b1_ref, g1_ref, be1_ref,
                  w2_ref, b2_ref, g2_ref, be2_ref,
                  w3_ref, b3_ref,
                  rel_ref):                        # [M, E] f32 out
    img = pl.program_id(0)
    n_valid = count_ref[img]
    m = s_ref.shape[0]

    rows = jax.lax.broadcasted_iota(jnp.int32, (m, 1), 0)
    mask = (rows < n_valid).astype(jnp.float32)
    inv_n = 1.0 / n_valid.astype(jnp.float32)

    # bf16 operands -> MXU, f32 accumulation.
    dot = functools.partial(jnp.dot, preferred_element_type=jnp.float32)

    # --- sub / obj embeddings (make_fc: Linear with bias) ---
    s_emb = dot(s_ref[...].astype(BF16), ws_ref[...]) + bs_ref[...]
    o_emb = dot(o_ref[...].astype(BF16), wo_ref[...]) + bo_ref[...]

    # --- ContextEncoder layer 1: concat(s_emb, o_emb) @ W1 == s_emb@W1_s + o_emb@W1_o
    h = (dot(s_emb.astype(BF16), w1s_ref[...])
         + dot(o_emb.astype(BF16), w1o_ref[...]) + b1_ref[...])
    h = jnp.maximum(_bn_train_masked(h, mask, inv_n, g1_ref[...], be1_ref[...]), 0.0)

    # --- ContextEncoder layer 2 ---
    h = dot(h.astype(BF16), w2_ref[...]) + b2_ref[...]
    h = jnp.maximum(_bn_train_masked(h, mask, inv_n, g2_ref[...], be2_ref[...]), 0.0)

    # --- ContextEncoder output FC ---
    rel_ref[...] = dot(h.astype(BF16), w3_ref[...]) + b3_ref[...]

    # NOTE: the Projection branch of the PyTorch module is intentionally not computed:
    # its output (pro_feats) is discarded by ResNetSimCLR.forward, which only returns
    # rel_feats. Dropping it removes ~1/3 of the FLOPs and one output DMA.


# ---------------------------------------------------------------------------
# Batched wrapper: one pallas_call for all images
# ---------------------------------------------------------------------------
def _round_up(x, m):
    return (x + m - 1) // m * m


def simclr_batched_forward(s_all, o_all, counts, params):
    """s_all / o_all: [n_img, m_pad, P] f32 (rows >= counts[i] are padding).
    counts: [n_img] int32. Returns rel_all: [n_img, m_pad, E] f32."""
    n_img, m_pad, p_dim = s_all.shape
    e_dim = params["w3"].shape[1]

    # bf16 matmul operands (halves weight DMA); biases / BN params stay f32.
    wbf = {k: params[k].astype(BF16) for k in ("ws", "wo", "w1s", "w1o", "w2", "w3")}

    def w_spec(arr):
        nd = arr.ndim
        return pl.BlockSpec(arr.shape, lambda i, counts_ref, _nd=nd: (0,) * _nd)

    row_spec = pl.BlockSpec((None, m_pad, p_dim), lambda i, counts_ref: (i, 0, 0))
    out_spec = pl.BlockSpec((None, m_pad, e_dim), lambda i, counts_ref: (i, 0, 0))

    weight_args = (wbf["ws"], params["bs"], wbf["wo"], params["bo"],
                   wbf["w1s"], wbf["w1o"], params["b1"], params["g1"], params["be1"],
                   wbf["w2"], params["b2"], params["g2"], params["be2"],
                   wbf["w3"], params["b3"])
    in_specs = [row_spec, row_spec] + [w_spec(a) for a in weight_args]

    grid_spec = pltpu.PrefetchScalarGridSpec(
        num_scalar_prefetch=1,          # counts -> SMEM, available to index_maps + kernel
        grid=(n_img,),
        in_specs=in_specs,
        out_specs=out_spec,
    )

    # TODO(synk): at real dims (512/1024) set vmem_limit_bytes explicitly for v7x's
    # 64 MiB VMEM and tile rows; at these toy sizes the defaults are ample.
    rel_all = pl.pallas_call(
        simclr_kernel,
        out_shape=jax.ShapeDtypeStruct((n_img, m_pad, e_dim), jnp.float32),
        grid_spec=grid_spec,
        compiler_params=pltpu.CompilerParams(
            dimension_semantics=("parallel",)),   # shard images across TCs on v7x
    )(counts, s_all, o_all, *weight_args)
    return rel_all


def resnet_simclr_forward(x, params):
    """x: list over images; each image is a list of (s_vec, o_vec) pairs (dim P each).
    Mirrors the PyTorch nested-list input; returns list of rel_feats per image."""
    n_img = len(x)
    num_rels = [len(pairs) for pairs in x]
    m_pad = max(8, _round_up(max(num_rels), 8))   # sublane-aligned row tile

    def pack(idx):
        per_img = []
        for pairs in x:
            f = jnp.stack([pr[idx] for pr in pairs], axis=0).astype(jnp.float32)
            f = jnp.pad(f, ((0, m_pad - f.shape[0]), (0, 0)))
            per_img.append(f)
        return jnp.stack(per_img, axis=0)         # [n_img, m_pad, P]

    s_all = pack(0)
    o_all = pack(1)
    counts = jnp.asarray(num_rels, jnp.int32)

    rel_all = simclr_batched_forward(s_all, o_all, counts, params)
    return [rel_all[i, :num_rels[i]] for i in range(n_img)]


# ---------------------------------------------------------------------------
# Deterministic parameter init (kaiming-uniform-like, a=1 -> bound = sqrt(3/fan_in))
# ---------------------------------------------------------------------------
def _kaiming_t(key, fan_in, fan_out):
    bound = (3.0 / fan_in) ** 0.5
    return jax.random.uniform(key, (fan_in, fan_out), jnp.float32, -bound, bound)


def _bias(key, fan_in, fan_out):
    bound = 1.0 / (fan_in ** 0.5)
    return jax.random.uniform(key, (1, fan_out), jnp.float32, -bound, bound)


def init_params(key, P=32, E=128, H=256):
    ks = jax.random.split(key, 10)
    w1 = _kaiming_t(ks[4], 2 * E, H)              # split so concat is never materialized
    return {
        "ws": _kaiming_t(ks[0], P, E), "bs": _bias(ks[1], P, E),
        "wo": _kaiming_t(ks[2], P, E), "bo": _bias(ks[3], P, E),
        "w1s": w1[:E], "w1o": w1[E:], "b1": _bias(ks[5], 2 * E, H),
        "g1": jnp.ones((1, H), jnp.float32), "be1": jnp.zeros((1, H), jnp.float32),
        "w2": _kaiming_t(ks[6], H, H), "b2": _bias(ks[7], H, H),
        "g2": jnp.ones((1, H), jnp.float32), "be2": jnp.zeros((1, H), jnp.float32),
        "w3": _kaiming_t(ks[8], H, E), "b3": _bias(ks[9], H, E),
    }


# ---------------------------------------------------------------------------
# Pure-JAX reference mirroring the kernel math (bf16 matmul operands, f32 BN)
# ---------------------------------------------------------------------------
def _bn_train(x, gamma=None, beta=None):
    mu = jnp.mean(x, axis=0, keepdims=True)
    var = jnp.mean((x - mu) ** 2, axis=0, keepdims=True)
    xn = (x - mu) * jax.lax.rsqrt(var + EPS)
    if gamma is not None:
        xn = xn * gamma + beta
    return xn


def _ref_image(s, o, p, pbf):
    dot = functools.partial(jnp.dot, preferred_element_type=jnp.float32)
    s_emb = dot(s.astype(BF16), pbf["ws"]) + p["bs"]
    o_emb = dot(o.astype(BF16), pbf["wo"]) + p["bo"]
    h = dot(s_emb.astype(BF16), pbf["w1s"]) + dot(o_emb.astype(BF16), pbf["w1o"]) + p["b1"]
    h = jnp.maximum(_bn_train(h, p["g1"], p["be1"]), 0.0)
    h = dot(h.astype(BF16), pbf["w2"]) + p["b2"]
    h = jnp.maximum(_bn_train(h, p["g2"], p["be2"]), 0.0)
    return dot(h.astype(BF16), pbf["w3"]) + p["b3"]


if __name__ == "__main__":
    key = jax.random.PRNGKey(0)
    pkey, dkey = jax.random.split(key)
    P, E, H = 32, 128, 256
    params = init_params(pkey, P=P, E=E, H=H)

    # 2 images with 7 and 5 relations; each relation is an (s, o) pair of P-dim vectors.
    num_rels = [7, 5]
    x = []
    for i, n in enumerate(num_rels):
        kk = jax.random.fold_in(dkey, i)
        feats = jax.random.normal(kk, (n, 2, P), jnp.float32)
        x.append([(feats[r, 0], feats[r, 1]) for r in range(n)])

    outs = resnet_simclr_forward(x, params)
    outs = jax.block_until_ready(outs)

    # Correctness check against a pure-JAX reference using the same bf16 operand math.
    pbf = {k: params[k].astype(BF16) for k in ("ws", "wo", "w1s", "w1o", "w2", "w3")}
    for i, rel in enumerate(outs):
        s = jnp.stack([pr[0] for pr in x[i]])
        o = jnp.stack([pr[1] for pr in x[i]])
        ref = _ref_image(s, o, params, pbf)
        assert rel.shape == (num_rels[i], E)
        err = float(jnp.max(jnp.abs(rel - ref)))
        assert jnp.allclose(rel, ref, atol=1e-3, rtol=1e-3), \
            f"mismatch on image {i}: max abs diff {err}"

    print("KERNEL_OK")
</pallas_src>

<mosaic_0001>
module attributes {stable_mosaic.version = 11 : i64} {
  func.func @simclr_kernel(%arg0: i32, %arg1: memref<2xi32, #tpu.memory_space<smem>>, %arg2: memref<1x8x32xf32, #tpu.memory_space<vmem>>, %arg3: memref<1x8x32xf32, #tpu.memory_space<vmem>>, %arg4: memref<32x128xbf16, #tpu.memory_space<vmem>>, %arg5: memref<1x128xf32, #tpu.memory_space<vmem>>, %arg6: memref<32x128xbf16, #tpu.memory_space<vmem>>, %arg7: memref<1x128xf32, #tpu.memory_space<vmem>>, %arg8: memref<128x256xbf16, #tpu.memory_space<vmem>>, %arg9: memref<128x256xbf16, #tpu.memory_space<vmem>>, %arg10: memref<1x256xf32, #tpu.memory_space<vmem>>, %arg11: memref<1x256xf32, #tpu.memory_space<vmem>>, %arg12: memref<1x256xf32, #tpu.memory_space<vmem>>, %arg13: memref<256x256xbf16, #tpu.memory_space<vmem>>, %arg14: memref<1x256xf32, #tpu.memory_space<vmem>>, %arg15: memref<1x256xf32, #tpu.memory_space<vmem>>, %arg16: memref<1x256xf32, #tpu.memory_space<vmem>>, %arg17: memref<256x128xbf16, #tpu.memory_space<vmem>>, %arg18: memref<1x128xf32, #tpu.memory_space<vmem>>, %arg19: memref<1x8x128xf32, #tpu.memory_space<vmem>>) attributes {dimension_semantics = [#tpu.dimension_semantics<parallel>], iteration_bounds = array<i64: 2>, scalar_prefetch = 1 : i64, scratch_operands = 0 : i64, tpu.core_type = #tpu.core_type<tc>, window_params = [{transform_indices = @transform_0, window_bounds = array<i64: 1, 8, 32>}, {transform_indices = @transform_1, window_bounds = array<i64: 1, 8, 32>}, {pipeline_mode = #tpu.pipeline_mode<synchronous>, transform_indices = @transform_2, window_bounds = array<i64: 32, 128>}, {pipeline_mode = #tpu.pipeline_mode<synchronous>, transform_indices = @transform_3, window_bounds = array<i64: 1, 128>}, {pipeline_mode = #tpu.pipeline_mode<synchronous>, transform_indices = @transform_4, window_bounds = array<i64: 32, 128>}, {pipeline_mode = #tpu.pipeline_mode<synchronous>, transform_indices = @transform_5, window_bounds = array<i64: 1, 128>}, {pipeline_mode = #tpu.pipeline_mode<synchronous>, transform_indices = @transform_6, window_bounds = array<i64: 128, 256>}, {pipeline_mode = #tpu.pipeline_mode<synchronous>, transform_indices = @transform_7, window_bounds = array<i64: 128, 256>}, {pipeline_mode = #tpu.pipeline_mode<synchronous>, transform_indices = @transform_8, window_bounds = array<i64: 1, 256>}, {pipeline_mode = #tpu.pipeline_mode<synchronous>, transform_indices = @transform_9, window_bounds = array<i64: 1, 256>}, {pipeline_mode = #tpu.pipeline_mode<synchronous>, transform_indices = @transform_10, window_bounds = array<i64: 1, 256>}, {pipeline_mode = #tpu.pipeline_mode<synchronous>, transform_indices = @transform_11, window_bounds = array<i64: 256, 256>}, {pipeline_mode = #tpu.pipeline_mode<synchronous>, transform_indices = @transform_12, window_bounds = array<i64: 1, 256>}, {pipeline_mode = #tpu.pipeline_mode<synchronous>, transform_indices = @transform_13, window_bounds = array<i64: 1, 256>}, {pipeline_mode = #tpu.pipeline_mode<synchronous>, transform_indices = @transform_14, window_bounds = array<i64: 1, 256>}, {pipeline_mode = #tpu.pipeline_mode<synchronous>, transform_indices = @transform_15, window_bounds = array<i64: 256, 128>}, {pipeline_mode = #tpu.pipeline_mode<synchronous>, transform_indices = @transform_16, window_bounds = array<i64: 1, 128>}, {transform_indices = @transform_17, window_bounds = array<i64: 1, 8, 128>}]} {
    %0 = arith.index_cast %arg0 : i32 to index
    %1 = memref.load %arg1[%0] : memref<2xi32, #tpu.memory_space<smem>>
    %2 = tpu.iota {dimensions = array<i32: 0>} : vector<8x1xi32>
    %3 = vector.broadcast %1 : i32 to vector<8x1xi32>
    %4 = arith.cmpi slt, %2, %3 : vector<8x1xi32>
    %5 = arith.extui %4 : vector<8x1xi1> to vector<8x1xi32>
    %6 = arith.sitofp %5 : vector<8x1xi32> to vector<8x1xf32>
    %7 = arith.sitofp %1 : i32 to f32
    %cst = arith.constant 1.000000e+00 : f32
    %8 = arith.divf %cst, %7 : f32
    %c0 = arith.constant 0 : index
    %c0_0 = arith.constant 0 : index
    %c0_1 = arith.constant 0 : index
    %9 = vector.load %arg2[%c0, %c0_0, %c0_1] : memref<1x8x32xf32, #tpu.memory_space<vmem>>, vector<1x8x32xf32>
    %10 = vector.shape_cast %9 : vector<1x8x32xf32> to vector<8x32xf32>
    %11 = arith.truncf %10 : vector<8x32xf32> to vector<8x32xbf16>
    %c0_2 = arith.constant 0 : index
    %c0_3 = arith.constant 0 : index
    %12 = vector.load %arg4[%c0_2, %c0_3] : memref<32x128xbf16, #tpu.memory_space<vmem>>, vector<32x128xbf16>
    %cst_4 = arith.constant dense<0.000000e+00> : vector<8x128xf32>
    %13 = tpu.matmul %11, %12, %cst_4 {dimension_numbers = #tpu.dot_dimension_numbers<[1], [0], [0], [1], [0, 0, 1, 1], [], []>} : vector<8x32xbf16>, vector<32x128xbf16>, vector<8x128xf32> -> vector<8x128xf32>
    %c0_5 = arith.constant 0 : index
    %c0_6 = arith.constant 0 : index
    %14 = vector.load %arg5[%c0_5, %c0_6] : memref<1x128xf32, #tpu.memory_space<vmem>>, vector<1x128xf32>
    %15 = vector.broadcast %14 : vector<1x128xf32> to vector<8x128xf32>
    %16 = arith.addf %13, %15 : vector<8x128xf32>
    %c0_7 = arith.constant 0 : index
    %c0_8 = arith.constant 0 : index
    %c0_9 = arith.constant 0 : index
    %17 = vector.load %arg3[%c0_7, %c0_8, %c0_9] : memref<1x8x32xf32, #tpu.memory_space<vmem>>, vector<1x8x32xf32>
    %18 = vector.shape_cast %17 : vector<1x8x32xf32> to vector<8x32xf32>
    %19 = arith.truncf %18 : vector<8x32xf32> to vector<8x32xbf16>
    %c0_10 = arith.constant 0 : index
    %c0_11 = arith.constant 0 : index
    %20 = vector.load %arg6[%c0_10, %c0_11] : memref<32x128xbf16, #tpu.memory_space<vmem>>, vector<32x128xbf16>
    %cst_12 = arith.constant dense<0.000000e+00> : vector<8x128xf32>
    %21 = tpu.matmul %19, %20, %cst_12 {dimension_numbers = #tpu.dot_dimension_numbers<[1], [0], [0], [1], [0, 0, 1, 1], [], []>} : vector<8x32xbf16>, vector<32x128xbf16>, vector<8x128xf32> -> vector<8x128xf32>
    %c0_13 = arith.constant 0 : index
    %c0_14 = arith.constant 0 : index
    %22 = vector.load %arg7[%c0_13, %c0_14] : memref<1x128xf32, #tpu.memory_space<vmem>>, vector<1x128xf32>
    %23 = vector.broadcast %22 : vector<1x128xf32> to vector<8x128xf32>
    %24 = arith.addf %21, %23 : vector<8x128xf32>
    %25 = arith.truncf %16 : vector<8x128xf32> to vector<8x128xbf16>
    %c0_15 = arith.constant 0 : index
    %c0_16 = arith.constant 0 : index
    %26 = vector.load %arg8[%c0_15, %c0_16] : memref<128x256xbf16, #tpu.memory_space<vmem>>, vector<128x256xbf16>
    %cst_17 = arith.constant dense<0.000000e+00> : vector<8x256xf32>
    %27 = tpu.matmul %25, %26, %cst_17 {dimension_numbers = #tpu.dot_dimension_numbers<[1], [0], [0], [1], [0, 0, 1, 1], [], []>} : vector<8x128xbf16>, vector<128x256xbf16>, vector<8x256xf32> -> vector<8x256xf32>
    %28 = arith.truncf %24 : vector<8x128xf32> to vector<8x128xbf16>
    %c0_18 = arith.constant 0 : index
    %c0_19 = arith.constant 0 : index
    %29 = vector.load %arg9[%c0_18, %c0_19] : memref<128x256xbf16, #tpu.memory_space<vmem>>, vector<128x256xbf16>
    %cst_20 = arith.constant dense<0.000000e+00> : vector<8x256xf32>
    %30 = tpu.matmul %28, %29, %cst_20 {dimension_numbers = #tpu.dot_dimension_numbers<[1], [0], [0], [1], [0, 0, 1, 1], [], []>} : vector<8x128xbf16>, vector<128x256xbf16>, vector<8x256xf32> -> vector<8x256xf32>
    %31 = arith.addf %27, %30 : vector<8x256xf32>
    %c0_21 = arith.constant 0 : index
    %c0_22 = arith.constant 0 : index
    %32 = vector.load %arg10[%c0_21, %c0_22] : memref<1x256xf32, #tpu.memory_space<vmem>>, vector<1x256xf32>
    %33 = vector.broadcast %32 : vector<1x256xf32> to vector<8x256xf32>
    %34 = arith.addf %31, %33 : vector<8x256xf32>
    %c0_23 = arith.constant 0 : index
    %c0_24 = arith.constant 0 : index
    %35 = vector.load %arg11[%c0_23, %c0_24] : memref<1x256xf32, #tpu.memory_space<vmem>>, vector<1x256xf32>
    %c0_25 = arith.constant 0 : index
    %c0_26 = arith.constant 0 : index
    %36 = vector.load %arg12[%c0_25, %c0_26] : memref<1x256xf32, #tpu.memory_space<vmem>>, vector<1x256xf32>
    %37 = vector.broadcast %6 : vector<8x1xf32> to vector<8x256xf32>
    %38 = arith.mulf %34, %37 : vector<8x256xf32>
    %cst_27 = arith.constant dense<0.000000e+00> : vector<256xf32>
    %39 = vector.multi_reduction <add>, %38, %cst_27 [0] : vector<8x256xf32> to vector<256xf32>
    %40 = vector.shape_cast %39 : vector<256xf32> to vector<1x256xf32>
    %41 = vector.broadcast %8 : f32 to vector<1x256xf32>
    %42 = arith.mulf %40, %41 : vector<1x256xf32>
    %43 = vector.broadcast %42 : vector<1x256xf32> to vector<8x256xf32>
    %44 = arith.subf %34, %43 : vector<8x256xf32>
    %45 = vector.broadcast %6 : vector<8x1xf32> to vector<8x256xf32>
    %46 = arith.mulf %44, %45 : vector<8x256xf32>
    %47 = arith.mulf %46, %46 : vector<8x256xf32>
    %cst_28 = arith.constant dense<0.000000e+00> : vector<256xf32>
    %48 = vector.multi_reduction <add>, %47, %cst_28 [0] : vector<8x256xf32> to vector<256xf32>
    %49 = vector.shape_cast %48 : vector<256xf32> to vector<1x256xf32>
    %50 = vector.broadcast %8 : f32 to vector<1x256xf32>
    %51 = arith.mulf %49, %50 : vector<1x256xf32>
    %52 = vector.broadcast %42 : vector<1x256xf32> to vector<8x256xf32>
    %53 = arith.subf %34, %52 : vector<8x256xf32>
    %cst_29 = arith.constant 9.99999974E-6 : f32
    %54 = vector.broadcast %cst_29 : f32 to vector<1x256xf32>
    %55 = arith.addf %51, %54 : vector<1x256xf32>
    %56 = math.rsqrt %55 : vector<1x256xf32>
    %57 = vector.broadcast %56 : vector<1x256xf32> to vector<8x256xf32>
    %58 = arith.mulf %53, %57 : vector<8x256xf32>
    %59 = vector.broadcast %35 : vector<1x256xf32> to vector<8x256xf32>
    %60 = arith.mulf %58, %59 : vector<8x256xf32>
    %61 = vector.broadcast %36 : vector<1x256xf32> to vector<8x256xf32>
    %62 = arith.addf %60, %61 : vector<8x256xf32>
    %cst_30 = arith.constant 0.000000e+00 : f32
    %63 = vector.broadcast %cst_30 : f32 to vector<8x256xf32>
    %64 = arith.maximumf %62, %63 : vector<8x256xf32>
    %65 = arith.truncf %64 : vector<8x256xf32> to vector<8x256xbf16>
    %c0_31 = arith.constant 0 : index
    %c0_32 = arith.constant 0 : index
    %66 = vector.load %arg13[%c0_31, %c0_32] : memref<256x256xbf16, #tpu.memory_space<vmem>>, vector<256x256xbf16>
    %cst_33 = arith.constant dense<0.000000e+00> : vector<8x256xf32>
    %67 = tpu.matmul %65, %66, %cst_33 {dimension_numbers = #tpu.dot_dimension_numbers<[1], [0], [0], [1], [0, 0, 1, 1], [], []>} : vector<8x256xbf16>, vector<256x256xbf16>, vector<8x256xf32> -> vector<8x256xf32>
    %c0_34 = arith.constant 0 : index
    %c0_35 = arith.constant 0 : index
    %68 = vector.load %arg14[%c0_34, %c0_35] : memref<1x256xf32, #tpu.memory_space<vmem>>, vector<1x256xf32>
    %69 = vector.broadcast %68 : vector<1x256xf32> to vector<8x256xf32>
    %70 = arith.addf %67, %69 : vector<8x256xf32>
    %c0_36 = arith.constant 0 : index
    %c0_37 = arith.constant 0 : index
    %71 = vector.load %arg15[%c0_36, %c0_37] : memref<1x256xf32, #tpu.memory_space<vmem>>, vector<1x256xf32>
    %c0_38 = arith.constant 0 : index
    %c0_39 = arith.constant 0 : index
    %72 = vector.load %arg16[%c0_38, %c0_39] : memref<1x256xf32, #tpu.memory_space<vmem>>, vector<1x256xf32>
    %73 = vector.broadcast %6 : vector<8x1xf32> to vector<8x256xf32>
    %74 = arith.mulf %70, %73 : vector<8x256xf32>
    %cst_40 = arith.constant dense<0.000000e+00> : vector<256xf32>
    %75 = vector.multi_reduction <add>, %74, %cst_40 [0] : vector<8x256xf32> to vector<256xf32>
    %76 = vector.shape_cast %75 : vector<256xf32> to vector<1x256xf32>
    %77 = vector.broadcast %8 : f32 to vector<1x256xf32>
    %78 = arith.mulf %76, %77 : vector<1x256xf32>
    %79 = vector.broadcast %78 : vector<1x256xf32> to vector<8x256xf32>
    %80 = arith.subf %70, %79 : vector<8x256xf32>
    %81 = vector.broadcast %6 : vector<8x1xf32> to vector<8x256xf32>
    %82 = arith.mulf %80, %81 : vector<8x256xf32>
    %83 = arith.mulf %82, %82 : vector<8x256xf32>
    %cst_41 = arith.constant dense<0.000000e+00> : vector<256xf32>
    %84 = vector.multi_reduction <add>, %83, %cst_41 [0] : vector<8x256xf32> to vector<256xf32>
    %85 = vector.shape_cast %84 : vector<256xf32> to vector<1x256xf32>
    %86 = vector.broadcast %8 : f32 to vector<1x256xf32>
    %87 = arith.mulf %85, %86 : vector<1x256xf32>
    %88 = vector.broadcast %78 : vector<1x256xf32> to vector<8x256xf32>
    %89 = arith.subf %70, %88 : vector<8x256xf32>
    %cst_42 = arith.constant 9.99999974E-6 : f32
    %90 = vector.broadcast %cst_42 : f32 to vector<1x256xf32>
    %91 = arith.addf %87, %90 : vector<1x256xf32>
    %92 = math.rsqrt %91 : vector<1x256xf32>
    %93 = vector.broadcast %92 : vector<1x256xf32> to vector<8x256xf32>
    %94 = arith.mulf %89, %93 : vector<8x256xf32>
    %95 = vector.broadcast %71 : vector<1x256xf32> to vector<8x256xf32>
    %96 = arith.mulf %94, %95 : vector<8x256xf32>
    %97 = vector.broadcast %72 : vector<1x256xf32> to vector<8x256xf32>
    %98 = arith.addf %96, %97 : vector<8x256xf32>
    %cst_43 = arith.constant 0.000000e+00 : f32
    %99 = vector.broadcast %cst_43 : f32 to vector<8x256xf32>
    %100 = arith.maximumf %98, %99 : vector<8x256xf32>
    %101 = arith.truncf %100 : vector<8x256xf32> to vector<8x256xbf16>
    %c0_44 = arith.constant 0 : index
    %c0_45 = arith.constant 0 : index
    %102 = vector.load %arg17[%c0_44, %c0_45] : memref<256x128xbf16, #tpu.memory_space<vmem>>, vector<256x128xbf16>
    %cst_46 = arith.constant dense<0.000000e+00> : vector<8x128xf32>
    %103 = tpu.matmul %101, %102, %cst_46 {dimension_numbers = #tpu.dot_dimension_numbers<[1], [0], [0], [1], [0, 0, 1, 1], [], []>} : vector<8x256xbf16>, vector<256x128xbf16>, vector<8x128xf32> -> vector<8x128xf32>
    %c0_47 = arith.constant 0 : index
    %c0_48 = arith.constant 0 : index
    %104 = vector.load %arg18[%c0_47, %c0_48] : memref<1x128xf32, #tpu.memory_space<vmem>>, vector<1x128xf32>
    %105 = vector.broadcast %104 : vector<1x128xf32> to vector<8x128xf32>
    %106 = arith.addf %103, %105 : vector<8x128xf32>
    %c0_49 = arith.constant 0 : index
    %c0_50 = arith.constant 0 : index
    %c0_51 = arith.constant 0 : index
    %107 = vector.load %arg19[%c0_49, %c0_50, %c0_51] : memref<1x8x128xf32, #tpu.memory_space<vmem>>, vector<1x8x128xf32>
    %108 = vector.shape_cast %107 : vector<1x8x128xf32> to vector<8x128xf32>
    %109 = vector.shape_cast %106 : vector<8x128xf32> to vector<1x8x128xf32>
    tpu.vector_store %arg19[%c0_49, %c0_50, %c0_51], %109 {strides = array<i32>} : memref<1x8x128xf32, #tpu.memory_space<vmem>>, vector<1x8x128xf32>,
    return
  }
  func.func @transform_0(%arg0: i32, %arg1: memref<2xi32, #tpu.memory_space<smem>>) -> (i32, i32, i32) {
    %c0_i32 = arith.constant 0 : i32
    %c0_i32_0 = arith.constant 0 : i32
    %c0_i32_1 = arith.constant 0 : i32
    return %arg0, %c0_i32, %c0_i32_0 : i32, i32, i32
  }
  func.func @transform_1(%arg0: i32, %arg1: memref<2xi32, #tpu.memory_space<smem>>) -> (i32, i32, i32) {
    %c0_i32 = arith.constant 0 : i32
    %c0_i32_0 = arith.constant 0 : i32
    %c0_i32_1 = arith.constant 0 : i32
    return %arg0, %c0_i32, %c0_i32_0 : i32, i32, i32
  }
  func.func @transform_2(%arg0: i32, %arg1: memref<2xi32, #tpu.memory_space<smem>>) -> (i32, i32) {
    %c0_i32 = arith.constant 0 : i32
    %c0_i32_0 = arith.constant 0 : i32
    %c0_i32_1 = arith.constant 0 : i32
    return %c0_i32, %c0_i32_0 : i32, i32
  }
  func.func @transform_3(%arg0: i32, %arg1: memref<2xi32, #tpu.memory_space<smem>>) -> (i32, i32) {
    %c0_i32 = arith.constant 0 : i32
    %c0_i32_0 = arith.constant 0 : i32
    %c0_i32_1 = arith.constant 0 : i32
    return %c0_i32, %c0_i32_0 : i32, i32
  }
  func.func @transform_4(%arg0: i32, %arg1: memref<2xi32, #tpu.memory_space<smem>>) -> (i32, i32) {
    %c0_i32 = arith.constant 0 : i32
    %c0_i32_0 = arith.constant 0 : i32
    %c0_i32_1 = arith.constant 0 : i32
    return %c0_i32, %c0_i32_0 : i32, i32
  }
  func.func @transform_5(%arg0: i32, %arg1: memref<2xi32, #tpu.memory_space<smem>>) -> (i32, i32) {
    %c0_i32 = arith.constant 0 : i32
    %c0_i32_0 = arith.constant 0 : i32
    %c0_i32_1 = arith.constant 0 : i32
    return %c0_i32, %c0_i32_0 : i32, i32
  }
  func.func @transform_6(%arg0: i32, %arg1: memref<2xi32, #tpu.memory_space<smem>>) -> (i32, i32) {
    %c0_i32 = arith.constant 0 : i32
    %c0_i32_0 = arith.constant 0 : i32
    %c0_i32_1 = arith.constant 0 : i32
    return %c0_i32, %c0_i32_0 : i32, i32
  }
  func.func @transform_7(%arg0: i32, %arg1: memref<2xi32, #tpu.memory_space<smem>>) -> (i32, i32) {
    %c0_i32 = arith.constant 0 : i32
    %c0_i32_0 = arith.constant 0 : i32
    %c0_i32_1 = arith.constant 0 : i32
    return %c0_i32, %c0_i32_0 : i32, i32
  }
  func.func @transform_8(%arg0: i32, %arg1: memref<2xi32, #tpu.memory_space<smem>>) -> (i32, i32) {
    %c0_i32 = arith.constant 0 : i32
    %c0_i32_0 = arith.constant 0 : i32
    %c0_i32_1 = arith.constant 0 : i32
    return %c0_i32, %c0_i32_0 : i32, i32
  }
  func.func @transform_9(%arg0: i32, %arg1: memref<2xi32, #tpu.memory_space<smem>>) -> (i32, i32) {
    %c0_i32 = arith.constant 0 : i32
    %c0_i32_0 = arith.constant 0 : i32
    %c0_i32_1 = arith.constant 0 : i32
    return %c0_i32, %c0_i32_0 : i32, i32
  }
  func.func @transform_10(%arg0: i32, %arg1: memref<2xi32, #tpu.memory_space<smem>>) -> (i32, i32) {
    %c0_i32 = arith.constant 0 : i32
    %c0_i32_0 = arith.constant 0 : i32
    %c0_i32_1 = arith.constant 0 : i32
    return %c0_i32, %c0_i32_0 : i32, i32
  }
  func.func @transform_11(%arg0: i32, %arg1: memref<2xi32, #tpu.memory_space<smem>>) -> (i32, i32) {
    %c0_i32 = arith.constant 0 : i32
    %c0_i32_0 = arith.constant 0 : i32
    %c0_i32_1 = arith.constant 0 : i32
    return %c0_i32, %c0_i32_0 : i32, i32
  }
  func.func @transform_12(%arg0: i32, %arg1: memref<2xi32, #tpu.memory_space<smem>>) -> (i32, i32) {
    %c0_i32 = arith.constant 0 : i32
    %c0_i32_0 = arith.constant 0 : i32
    %c0_i32_1 = arith.constant 0 : i32
    return %c0_i32, %c0_i32_0 : i32, i32
  }
  func.func @transform_13(%arg0: i32, %arg1: memref<2xi32, #tpu.memory_space<smem>>) -> (i32, i32) {
    %c0_i32 = arith.constant 0 : i32
    %c0_i32_0 = arith.constant 0 : i32
    %c0_i32_1 = arith.constant 0 : i32
    return %c0_i32, %c0_i32_0 : i32, i32
  }
  func.func @transform_14(%arg0: i32, %arg1: memref<2xi32, #tpu.memory_space<smem>>) -> (i32, i32) {
    %c0_i32 = arith.constant 0 : i32
    %c0_i32_0 = arith.constant 0 : i32
    %c0_i32_1 = arith.constant 0 : i32
    return %c0_i32, %c0_i32_0 : i32, i32
  }
  func.func @transform_15(%arg0: i32, %arg1: memref<2xi32, #tpu.memory_space<smem>>) -> (i32, i32) {
    %c0_i32 = arith.constant 0 : i32
    %c0_i32_0 = arith.constant 0 : i32
    %c0_i32_1 = arith.constant 0 : i32
    return %c0_i32, %c0_i32_0 : i32, i32
  }
  func.func @transform_16(%arg0: i32, %arg1: memref<2xi32, #tpu.memory_space<smem>>) -> (i32, i32) {
    %c0_i32 = arith.constant 0 : i32
    %c0_i32_0 = arith.constant 0 : i32
    %c0_i32_1 = arith.constant 0 : i32
    return %c0_i32, %c0_i32_0 : i32, i32
  }
  func.func @transform_17(%arg0: i32, %arg1: memref<2xi32, #tpu.memory_space<smem>>) -> (i32, i32, i32) {
    %c0_i32 = arith.constant 0 : i32
    %c0_i32_0 = arith.constant 0 : i32
    %c0_i32_1 = arith.constant 0 : i32
    return %arg0, %c0_i32, %c0_i32_0 : i32, i32, i32
  }
}

</mosaic_0001>

<llo_original>
// kernel: tpu_custom_call.1
$region0: #{tpu_custom_call.1}
  #allocation0 [shape = 'u32[]', space=smem, size = 0x4, offset = 0x4, fixed_abs, tag = 'smem constant byte address 0x4 - core index']
  #allocation1 [shape = 'u32[72,128]{1,0:T(1,128)}', space=vmem, size = 0x9000, scoped, tag = 'internal scratch']
  #allocation2 [shape = 's32[1]{0}', space=sflag, size = 0x4, scoped, tag = 'scoped memory for tpu_custom_call.1']
  #allocation3 [shape = 'u8[512]{0}', space=smem, size = 0x200, scoped, tag = 'prefetched SMEM operand 0']
  %s0 = inlined_call_operand.hbm [shape: s32[2], index: 0, kind: input, shape index: {}]
  %s1 = inlined_call_operand.hbm [shape: f32[2,8,32], index: 1, kind: input, shape index: {}]
  %s2 = inlined_call_operand.hbm [shape: f32[2,8,32], index: 2, kind: input, shape index: {}]
  %s3 = inlined_call_operand.hbm [shape: bf16[32,128], index: 3, kind: input, shape index: {}]
  %s4 = inlined_call_operand.hbm [shape: f32[1,128], index: 4, kind: input, shape index: {}]
  %s5 = inlined_call_operand.hbm [shape: bf16[32,128], index: 5, kind: input, shape index: {}]
  %s6 = inlined_call_operand.hbm [shape: f32[1,128], index: 6, kind: input, shape index: {}]
  %s7 = inlined_call_operand.hbm [shape: bf16[128,256], index: 7, kind: input, shape index: {}]
  %s8 = inlined_call_operand.hbm [shape: bf16[128,256], index: 8, kind: input, shape index: {}]
  %s9 = inlined_call_operand.vmem [shape: f32[1,256], index: 9, kind: input, shape index: {}]
  %s10 = inlined_call_operand.vmem [shape: f32[1,256], index: 10, kind: input, shape index: {}]
  %s11 = inlined_call_operand.vmem [shape: f32[1,256], index: 11, kind: input, shape index: {}]
  %s12 = inlined_call_operand.hbm [shape: bf16[256,256], index: 12, kind: input, shape index: {}]
  %s13 = inlined_call_operand.vmem [shape: f32[1,256], index: 13, kind: input, shape index: {}]
  %s14 = inlined_call_operand.vmem [shape: f32[1,256], index: 14, kind: input, shape index: {}]
  %s15 = inlined_call_operand.vmem [shape: f32[1,256], index: 15, kind: input, shape index: {}]
  %s16 = inlined_call_operand.hbm [shape: bf16[256,128], index: 16, kind: input, shape index: {}]
  %s17 = inlined_call_operand.vmem [shape: f32[1,128], index: 17, kind: input, shape index: {}]
  %s18 = inlined_call_operand.hbm [shape: f32[2,8,128], index: 18, kind: output, shape index: {}]
  %s19 = sld [smem:[#allocation0]]
  $region141: #{tpu_custom_call.1} parent=0
    _
  %s21 = ssub.s32 1, %s19
  %s22 = scalar_select 0, %s21, %s19
  %s24 = sshll.u32 %s0, 4
  %s25 = int_to_ptr.hbm [resolvable:$true] %s24
  %27 = dma.hbm_to_smem %s25, 16, [#allocation3], [#allocation2]
  %29 = dma.done [#allocation2], 16
  %30 = sfence
  $region1: #{tpu_custom_call.1} parent=0
    #allocation4 [shape = 'u8[8192]{0}', space=vmem, size = 0x2000, scoped, tag = 'input window, operand 1']
    #allocation5 [shape = 's32[2]{0}', space=sflag, size = 0x8, scoped, tag = 'scoped memory for tpu_custom_call.1']
    #allocation6 [shape = 's32[2]{0}', space=sflag, size = 0x8, scoped, tag = 'scoped memory for tpu_custom_call.1']
    #allocation7 [shape = 'u8[8192]{0}', space=vmem, size = 0x2000, scoped, tag = 'input window, operand 2']
    #allocation8 [shape = 's32[2]{0}', space=sflag, size = 0x8, scoped, tag = 'scoped memory for tpu_custom_call.1']
    #allocation9 [shape = 'u8[8192]{0}', space=vmem, size = 0x2000, scoped, tag = 'input window, operand 3, single buffered']
    #allocation10 [shape = 'u8[512]{0}', space=vmem, size = 0x400, scoped, tag = 'input window, operand 4, single buffered']
    #allocation11 [shape = 's32[1]{0}', space=sflag, size = 0x4, scoped, tag = 'scoped memory for tpu_custom_call.1']
    #allocation12 [shape = 'u8[8192]{0}', space=vmem, size = 0x2000, scoped, tag = 'input window, operand 5, single buffered']
    #allocation13 [shape = 'u8[512]{0}', space=vmem, size = 0x400, scoped, tag = 'input window, operand 6, single buffered']
    #allocation14 [shape = 's32[1]{0}', space=sflag, size = 0x4, scoped, tag = 'scoped memory for tpu_custom_call.1']
    #allocation15 [shape = 'u8[65536]{0}', space=vmem, size = 0x10000, scoped, tag = 'input window, operand 7, single buffered']
    #allocation16 [shape = 'u8[65536]{0}', space=vmem, size = 0x10000, scoped, tag = 'input window, operand 8, single buffered']
    #allocation17 [shape = 's32[1]{0}', space=sflag, size = 0x4, scoped, tag = 'scoped memory for tpu_custom_call.1']
    #allocation18 [shape = 'u8[131072]{0}', space=vmem, size = 0x20000, scoped, tag = 'input window, operand 12, single buffered']
    #allocation19 [shape = 'u8[65536]{0}', space=vmem, size = 0x10000, scoped, tag = 'input window, operand 16, single buffered']
    #allocation20 [shape = 's32[1]{0}', space=sflag, size = 0x4, scoped, tag = 'scoped memory for tpu_custom_call.1']
    #allocation21 [shape = 'u8[8192]{0}', space=vmem, size = 0x2000, scoped, tag = 'output window, operand 0']
    %31 = vsyncpa [#allocation5], 0
    %s32 = scalar_lea.sflag [#allocation5], 1
    %33 = vsyncpa %s32, 0
    %34 = vsyncpa [#allocation8], 0
    %s35 = scalar_lea.sflag [#allocation8], 1
    %36 = vsyncpa %s35, 0
    %37 = vsyncpa [#allocation11], 0
    %38 = vsyncpa [#allocation14], 0
    %39 = vsyncpa [#allocation17], 0
    %40 = vsyncpa [#allocation20], 0
    %41 = vsyncpa [#allocation6], 0
    %s42 = scalar_lea.sflag [#allocation6], 1
    %43 = vsyncpa %s42, 0
    loop: start=0, step=1, limit=4
    $region2: #{tpu_custom_call.1} parent=1 // loop_pre_header
      _
    $region3: #{tpu_custom_call.1} parent=1 // loop_header
      %s45 = sphi 0, %s49
      %p46 = scmp.ge.s32.totalorder %s45, 4
      %s55 = sphi 0, %s57
      %s58 = sphi 0, %s55
      %s59 = sphi 0, %s58
      %s75 = sphi 0, %s59
      %s81 = sphi 0, %s83
      %s84 = sphi 0, %s81
      %s85 = sphi 0, %s84
      %s101 = sphi 0, %s85
      %s105 = sphi 0, %s105
      %s107 = sphi 0, %s105
      %s108 = sphi 0, %s107
      %s122 = sphi 0, %s108
      %s126 = sphi 0, %s126
      %s128 = sphi 0, %s126
      %s129 = sphi 0, %s128
      %s143 = sphi 0, %s129
      %s147 = sphi 0, %s147
      %s149 = sphi 0, %s147
      %s150 = sphi 0, %s149
      %s164 = sphi 0, %s150
      %s168 = sphi 0, %s168
      %s170 = sphi 0, %s168
      %s171 = sphi 0, %s170
      %s185 = sphi 0, %s171
      %s189 = sphi 0, %s189
      %s191 = sphi 0, %s189
      %s192 = sphi 0, %s191
      %s206 = sphi 0, %s192
      %s210 = sphi 0, %s210
      %s212 = sphi 0, %s210
      %s213 = sphi 0, %s212
      %s227 = sphi 0, %s213
      %s231 = sphi 0, %s231
      %s233 = sphi 0, %s231
      %s234 = sphi 0, %s233
      %s248 = sphi 0, %s234
      %s252 = sphi 0, %s252
      %s254 = sphi 0, %s252
      %s255 = sphi 0, %s254
      %s269 = sphi 0, %s255
      %s273 = sphi 0, %s273
      %s275 = sphi 0, %s273
      %s276 = sphi 0, %s275
      %s290 = sphi 0, %s276
      %s294 = sphi 0, %s294
      %s296 = sphi 0, %s294
      %s297 = sphi 0, %s296
      %s311 = sphi 0, %s297
      %s315 = sphi 0, %s315
      %s317 = sphi 0, %s315
      %s318 = sphi 0, %s317
      %s332 = sphi 0, %s318
      %s336 = sphi 0, %s336
      %s338 = sphi 0, %s336
      %s339 = sphi 0, %s338
      %s353 = sphi 0, %s339
      %s357 = sphi 0, %s357
      %s359 = sphi 0, %s357
      %s360 = sphi 0, %s359
      %s374 = sphi 0, %s360
      %s378 = sphi 0, %s378
      %s380 = sphi 0, %s378
      %s381 = sphi 0, %s380
      %s395 = sphi 0, %s381
      %s399 = sphi 0, %s399
      %s401 = sphi 0, %s399
      %s402 = sphi 0, %s401
      %s416 = sphi 0, %s402
      %s422 = sphi 0, %s424
      %s425 = sphi 0, %s422
      %s426 = sphi 0, %s425
      %s442 = sphi 0, %s426
    $region4: #{tpu_custom_call.1} parent=1 // loop_header_branch
      %48 = sbr.rel (%p46) target = $region8
    $region5: #{tpu_custom_call.1} parent=1 // loop_body
      %s50 = ssub.s32 %s45, 1
      %s51 = ssub.s32 %s45, 2
      %s52 = sadd.s32 %s45, 1
      %s53 = ssub.s32 %s45, %s52
      %p54 = scmp.eq.s32.totalorder %s53, 0
      %s56 = sadd.s32 %s55, 1
      %s57 = scalar_select %p54, %s55, %s56
      %p60 = pneg %p54
      %p61 = scmp.eq.s32.totalorder %s45, 1
      %p62 = por %p60, %p61
      %p63 = scmp.ne.s32.totalorder %s55, %s58
      %p64 = scmp.eq.s32.totalorder %s45, 0
      %p65 = por %p63, %p64
      %p66 = scmp.ne.s32.totalorder %s55, %s58
      %p67 = scmp.eq.s32.totalorder %s50, 1
      %p68 = por %p66, %p67
      %p69 = scmp.ne.s32.totalorder %s58, %s59
      %p70 = scmp.eq.s32.totalorder %s50, 0
      %p71 = por %p69, %p70
      %p72 = scmp.ne.s32.totalorder %s58, %s59
      %p73 = scmp.eq.s32.totalorder %s51, 1
      %p74 = por %p72, %p73
      %p76 = scmp.ne.s32.totalorder %s59, %s75
      %p77 = scmp.eq.s32.totalorder %s51, 0
      %p78 = por %p76, %p77
      %s79 = ssub.s32 %s45, %s52
      %p80 = scmp.eq.s32.totalorder %s79, 0
      %s82 = sadd.s32 %s81, 1
      %s83 = scalar_select %p80, %s81, %s82
      %p86 = pneg %p80
      %p87 = scmp.eq.s32.totalorder %s45, 1
      %p88 = por %p86, %p87
      %p89 = scmp.ne.s32.totalorder %s81, %s84
      %p90 = scmp.eq.s32.totalorder %s45, 0
      %p91 = por %p89, %p90
      %p92 = scmp.ne.s32.totalorder %s81, %s84
      %p93 = scmp.eq.s32.totalorder %s50, 1
      %p94 = por %p92, %p93
      %p95 = scmp.ne.s32.totalorder %s84, %s85
      %p96 = scmp.eq.s32.totalorder %s50, 0
      %p97 = por %p95, %p96
      %p98 = scmp.ne.s32.totalorder %s84, %s85
      %p99 = scmp.eq.s32.totalorder %s51, 1
      %p100 = por %p98, %p99
      %p102 = scmp.ne.s32.totalorder %s85, %s101
      %p103 = scmp.eq.s32.totalorder %s51, 0
      %p104 = por %p102, %p103
      %s106 = sadd.s32 %s105, 1
      %p109 = scmp.eq.s32.totalorder %s45, 1
      %p110 = scmp.ne.s32.totalorder %s105, %s107
      %p111 = scmp.eq.s32.totalorder %s45, 0
      %p112 = por %p110, %p111
      %p113 = scmp.ne.s32.totalorder %s105, %s107
      %p114 = scmp.eq.s32.totalorder %s50, 1
      %p115 = por %p113, %p114
      %p116 = scmp.ne.s32.totalorder %s107, %s108
      %p117 = scmp.eq.s32.totalorder %s50, 0
      %p118 = por %p116, %p117
      %p119 = scmp.ne.s32.totalorder %s107, %s108
      %p120 = scmp.eq.s32.totalorder %s51, 1
      %p121 = por %p119, %p120
      %p123 = scmp.ne.s32.totalorder %s108, %s122
      %p124 = scmp.eq.s32.totalorder %s51, 0
      %p125 = por %p123, %p124
      %s127 = sadd.s32 %s126, 1
      %p130 = scmp.eq.s32.totalorder %s45, 1
      %p131 = scmp.ne.s32.totalorder %s126, %s128
      %p132 = scmp.eq.s32.totalorder %s45, 0
      %p133 = por %p131, %p132
      %p134 = scmp.ne.s32.totalorder %s126, %s128
      %p135 = scmp.eq.s32.totalorder %s50, 1
      %p136 = por %p134, %p135
      %p137 = scmp.ne.s32.totalorder %s128, %s129
      %p138 = scmp.eq.s32.totalorder %s50, 0
      %p139 = por %p137, %p138
      %p140 = scmp.ne.s32.totalorder %s128, %s129
      %p141 = scmp.eq.s32.totalorder %s51, 1
      %p142 = por %p140, %p141
      %p144 = scmp.ne.s32.totalorder %s129, %s143
      %p145 = scmp.eq.s32.totalorder %s51, 0
      %p146 = por %p144, %p145
      %s148 = sadd.s32 %s147, 1
      %p151 = scmp.eq.s32.totalorder %s45, 1
      %p152 = scmp.ne.s32.totalorder %s147, %s149
      %p153 = scmp.eq.s32.totalorder %s45, 0
      %p154 = por %p152, %p153
      %p155 = scmp.ne.s32.totalorder %s147, %s149
      %p156 = scmp.eq.s32.totalorder %s50, 1
      %p157 = por %p155, %p156
      %p158 = scmp.ne.s32.totalorder %s149, %s150
      %p159 = scmp.eq.s32.totalorder %s50, 0
      %p160 = por %p158, %p159
      %p161 = scmp.ne.s32.totalorder %s149, %s150
      %p162 = scmp.eq.s32.totalorder %s51, 1
      %p163 = por %p161, %p162
      %p165 = scmp.ne.s32.totalorder %s150, %s164
      %p166 = scmp.eq.s32.totalorder %s51, 0
      %p167 = por %p165, %p166
      %s169 = sadd.s32 %s168, 1
      %p172 = scmp.eq.s32.totalorder %s45, 1
      %p173 = scmp.ne.s32.totalorder %s168, %s170
      %p174 = scmp.eq.s32.totalorder %s45, 0
      %p175 = por %p173, %p174
      %p176 = scmp.ne.s32.totalorder %s168, %s170
      %p177 = scmp.eq.s32.totalorder %s50, 1
      %p178 = por %p176, %p177
      %p179 = scmp.ne.s32.totalorder %s170, %s171
      %p180 = scmp.eq.s32.totalorder %s50, 0
      %p181 = por %p179, %p180
      %p182 = scmp.ne.s32.totalorder %s170, %s171
      %p183 = scmp.eq.s32.totalorder %s51, 1
      %p184 = por %p182, %p183
      %p186 = scmp.ne.s32.totalorder %s171, %s185
      %p187 = scmp.eq.s32.totalorder %s51, 0
      %p188 = por %p186, %p187
      %s190 = sadd.s32 %s189, 1
      %p193 = scmp.eq.s32.totalorder %s45, 1
      %p194 = scmp.ne.s32.totalorder %s189, %s191
      %p195 = scmp.eq.s32.totalorder %s45, 0
      %p196 = por %p194, %p195
      %p197 = scmp.ne.s32.totalorder %s189, %s191
      %p198 = scmp.eq.s32.totalorder %s50, 1
      %p199 = por %p197, %p198
      %p200 = scmp.ne.s32.totalorder %s191, %s192
      %p201 = scmp.eq.s32.totalorder %s50, 0
      %p202 = por %p200, %p201
      %p203 = scmp.ne.s32.totalorder %s191, %s192
      %p204 = scmp.eq.s32.totalorder %s51, 1
      %p205 = por %p203, %p204
      %p207 = scmp.ne.s32.totalorder %s192, %s206
      %p208 = scmp.eq.s32.totalorder %s51, 0
      %p209 = por %p207, %p208
      %s211 = sadd.s32 %s210, 1
      %p214 = scmp.eq.s32.totalorder %s45, 1
      %p215 = scmp.ne.s32.totalorder %s210, %s212
      %p216 = scmp.eq.s32.totalorder %s45, 0
      %p217 = por %p215, %p216
      %p218 = scmp.ne.s32.totalorder %s210, %s212
      %p219 = scmp.eq.s32.totalorder %s50, 1
      %p220 = por %p218, %p219
      %p221 = scmp.ne.s32.totalorder %s212, %s213
      %p222 = scmp.eq.s32.totalorder %s50, 0
      %p223 = por %p221, %p222
      %p224 = scmp.ne.s32.totalorder %s212, %s213
      %p225 = scmp.eq.s32.totalorder %s51, 1
      %p226 = por %p224, %p225
      %p228 = scmp.ne.s32.totalorder %s213, %s227
      %p229 = scmp.eq.s32.totalorder %s51, 0
      %p230 = por %p228, %p229
      %s232 = sadd.s32 %s231, 1
      %p235 = scmp.eq.s32.totalorder %s45, 1
      %p236 = scmp.ne.s32.totalorder %s231, %s233
      %p237 = scmp.eq.s32.totalorder %s45, 0
      %p238 = por %p236, %p237
      %p239 = scmp.ne.s32.totalorder %s231, %s233
      %p240 = scmp.eq.s32.totalorder %s50, 1
      %p241 = por %p239, %p240
      %p242 = scmp.ne.s32.totalorder %s233, %s234
      %p243 = scmp.eq.s32.totalorder %s50, 0
      %p244 = por %p242, %p243
      %p245 = scmp.ne.s32.totalorder %s233, %s234
      %p246 = scmp.eq.s32.totalorder %s51, 1
      %p247 = por %p245, %p246
      %p249 = scmp.ne.s32.totalorder %s234, %s248
      %p250 = scmp.eq.s32.totalorder %s51, 0
      %p251 = por %p249, %p250
      %s253 = sadd.s32 %s252, 1
      %p256 = scmp.eq.s32.totalorder %s45, 1
      %p257 = scmp.ne.s32.totalorder %s252, %s254
      %p258 = scmp.eq.s32.totalorder %s45, 0
      %p259 = por %p257, %p258
      %p260 = scmp.ne.s32.totalorder %s252, %s254
      %p261 = scmp.eq.s32.totalorder %s50, 1
      %p262 = por %p260, %p261
      %p263 = scmp.ne.s32.totalorder %s254, %s255
      %p264 = scmp.eq.s32.totalorder %s50, 0
      %p265 = por %p263, %p264
      %p266 = scmp.ne.s32.totalorder %s254, %s255
      %p267 = scmp.eq.s32.totalorder %s51, 1
      %p268 = por %p266, %p267
      %p270 = scmp.ne.s32.totalorder %s255, %s269
      %p271 = scmp.eq.s32.totalorder %s51, 0
      %p272 = por %p270, %p271
      %s274 = sadd.s32 %s273, 1
      %p277 = scmp.eq.s32.totalorder %s45, 1
      %p278 = scmp.ne.s32.totalorder %s273, %s275
      %p279 = scmp.eq.s32.totalorder %s45, 0
      %p280 = por %p278, %p279
      %p281 = scmp.ne.s32.totalorder %s273, %s275
      %p282 = scmp.eq.s32.totalorder %s50, 1
      %p283 = por %p281, %p282
      %p284 = scmp.ne.s32.totalorder %s275, %s276
      %p285 = scmp.eq.s32.totalorder %s50, 0
      %p286 = por %p284, %p285
      %p287 = scmp.ne.s32.totalorder %s275, %s276
      %p288 = scmp.eq.s32.totalorder %s51, 1
      %p289 = por %p287, %p288
      %p291 = scmp.ne.s32.totalorder %s276, %s290
      %p292 = scmp.eq.s32.totalorder %s51, 0
      %p293 = por %p291, %p292
      %s295 = sadd.s32 %s294, 1
      %p298 = scmp.eq.s32.totalorder %s45, 1
      %p299 = scmp.ne.s32.totalorder %s294, %s296
      %p300 = scmp.eq.s32.totalorder %s45, 0
      %p301 = por %p299, %p300
      %p302 = scmp.ne.s32.totalorder %s294, %s296
      %p303 = scmp.eq.s32.totalorder %s50, 1
      %p304 = por %p302, %p303
      %p305 = scmp.ne.s32.totalorder %s296, %s297
      %p306 = scmp.eq.s32.totalorder %s50, 0
      %p307 = por %p305, %p306
      %p308 = scmp.ne.s32.totalorder %s296, %s297
      %p309 = scmp.eq.s32.totalorder %s51, 1
      %p310 = por %p308, %p309
      %p312 = scmp.ne.s32.totalorder %s297, %s311
      %p313 = scmp.eq.s32.totalorder %s51, 0
      %p314 = por %p312, %p313
      %s316 = sadd.s32 %s315, 1
      %p319 = scmp.eq.s32.totalorder %s45, 1
      %p320 = scmp.ne.s32.totalorder %s315, %s317
      %p321 = scmp.eq.s32.totalorder %s45, 0
      %p322 = por %p320, %p321
      %p323 = scmp.ne.s32.totalorder %s315, %s317
      %p324 = scmp.eq.s32.totalorder %s50, 1
      %p325 = por %p323, %p324
      %p326 = scmp.ne.s32.totalorder %s317, %s318
      %p327 = scmp.eq.s32.totalorder %s50, 0
      %p328 = por %p326, %p327
      %p329 = scmp.ne.s32.totalorder %s317, %s318
      %p330 = scmp.eq.s32.totalorder %s51, 1
      %p331 = por %p329, %p330
      %p333 = scmp.ne.s32.totalorder %s318, %s332
      %p334 = scmp.eq.s32.totalorder %s51, 0
      %p335 = por %p333, %p334
      %s337 = sadd.s32 %s336, 1
      %p340 = scmp.eq.s32.totalorder %s45, 1
      %p341 = scmp.ne.s32.totalorder %s336, %s338
      %p342 = scmp.eq.s32.totalorder %s45, 0
      %p343 = por %p341, %p342
      %p344 = scmp.ne.s32.totalorder %s336, %s338
      %p345 = scmp.eq.s32.totalorder %s50, 1
      %p346 = por %p344, %p345
      %p347 = scmp.ne.s32.totalorder %s338, %s339
      %p348 = scmp.eq.s32.totalorder %s50, 0
      %p349 = por %p347, %p348
      %p350 = scmp.ne.s32.totalorder %s338, %s339
      %p351 = scmp.eq.s32.totalorder %s51, 1
      %p352 = por %p350, %p351
      %p354 = scmp.ne.s32.totalorder %s339, %s353
      %p355 = scmp.eq.s32.totalorder %s51, 0
      %p356 = por %p354, %p355
      %s358 = sadd.s32 %s357, 1
      %p361 = scmp.eq.s32.totalorder %s45, 1
      %p362 = scmp.ne.s32.totalorder %s357, %s359
      %p363 = scmp.eq.s32.totalorder %s45, 0
      %p364 = por %p362, %p363
      %p365 = scmp.ne.s32.totalorder %s357, %s359
      %p366 = scmp.eq.s32.totalorder %s50, 1
      %p367 = por %p365, %p366
      %p368 = scmp.ne.s32.totalorder %s359, %s360
      %p369 = scmp.eq.s32.totalorder %s50, 0
      %p370 = por %p368, %p369
      %p371 = scmp.ne.s32.totalorder %s359, %s360
      %p372 = scmp.eq.s32.totalorder %s51, 1
      %p373 = por %p371, %p372
      %p375 = scmp.ne.s32.totalorder %s360, %s374
      %p376 = scmp.eq.s32.totalorder %s51, 0
      %p377 = por %p375, %p376
      %s379 = sadd.s32 %s378, 1
      %p382 = scmp.eq.s32.totalorder %s45, 1
      %p383 = scmp.ne.s32.totalorder %s378, %s380
      %p384 = scmp.eq.s32.totalorder %s45, 0
      %p385 = por %p383, %p384
      %p386 = scmp.ne.s32.totalorder %s378, %s380
      %p387 = scmp.eq.s32.totalorder %s50, 1
      %p388 = por %p386, %p387
      %p389 = scmp.ne.s32.totalorder %s380, %s381
      %p390 = scmp.eq.s32.totalorder %s50, 0
      %p391 = por %p389, %p390
      %p392 = scmp.ne.s32.totalorder %s380, %s381
      %p393 = scmp.eq.s32.totalorder %s51, 1
      %p394 = por %p392, %p393
      %p396 = scmp.ne.s32.totalorder %s381, %s395
      %p397 = scmp.eq.s32.totalorder %s51, 0
      %p398 = por %p396, %p397
      %s400 = sadd.s32 %s399, 1
      %p403 = scmp.eq.s32.totalorder %s45, 1
      %p404 = scmp.ne.s32.totalorder %s399, %s401
      %p405 = scmp.eq.s32.totalorder %s45, 0
      %p406 = por %p404, %p405
      %p407 = scmp.ne.s32.totalorder %s399, %s401
      %p408 = scmp.eq.s32.totalorder %s50, 1
      %p409 = por %p407, %p408
      %p410 = scmp.ne.s32.totalorder %s401, %s402
      %p411 = scmp.eq.s32.totalorder %s50, 0
      %p412 = por %p410, %p411
      %p413 = scmp.ne.s32.totalorder %s401, %s402
      %p414 = scmp.eq.s32.totalorder %s51, 1
      %p415 = por %p413, %p414
      %p417 = scmp.ne.s32.totalorder %s402, %s416
      %p418 = scmp.eq.s32.totalorder %s51, 0
      %p419 = por %p417, %p418
      %s420 = ssub.s32 %s45, %s52
      %p421 = scmp.eq.s32.totalorder %s420, 0
      %s423 = sadd.s32 %s422, 1
      %s424 = scalar_select %p421, %s422, %s423
      %p427 = pneg %p421
      %p428 = scmp.eq.s32.totalorder %s45, 1
      %p429 = por %p427, %p428
      %p430 = scmp.ne.s32.totalorder %s422, %s425
      %p431 = scmp.eq.s32.totalorder %s45, 0
      %p432 = por %p430, %p431
      %p433 = scmp.ne.s32.totalorder %s422, %s425
      %p434 = scmp.eq.s32.totalorder %s50, 1
      %p435 = por %p433, %p434
      %p436 = scmp.ne.s32.totalorder %s425, %s426
      %p437 = scmp.eq.s32.totalorder %s50, 0
      %p438 = por %p436, %p437
      %p439 = scmp.ne.s32.totalorder %s425, %s426
      %p440 = scmp.eq.s32.totalorder %s51, 1
      %p441 = por %p439, %p440
      %p443 = scmp.ne.s32.totalorder %s426, %s442
      %p444 = scmp.eq.s32.totalorder %s51, 0
      %p445 = por %p443, %p444
      %p446 = scmp.le.s32.totalorder 1, %s45
      %p447 = scmp.lt.s32.totalorder %s45, 3
      %p448 = pnand %p446, %p447
      %p449 = pneg %p448
      // Predicated region
      $region9: #{tpu_custom_call.1} parent=5 // pred_check
        _
      $region10: #{tpu_custom_call.1} parent=5 // pred_check_branch
        %451 = sbr.rel (%p448) target = $region12
      $region11: #{tpu_custom_call.1} parent=5 // pred_region
        %s452 = ssub.s32 %s45, 1
        // Predicated region
        $region13: #{tpu_custom_call.1} parent=11 // pred_check
          %p453 = pneg %p118
        $region14: #{tpu_custom_call.1} parent=11 // pred_check_branch
          %455 = sbr.rel (%p453) target = $region16
        $region15: #{tpu_custom_call.1} parent=11 // pred_region
          %457 = vsyncadd [#allocation8], 0
          %s458 = sshll.u32 %s3, 4
          %s459 = int_to_ptr.hbm [resolvable:$true] %s458
          %s460 = sshll.u32 [#allocation9], 4
          %s461 = int_to_ptr.vmem [resolvable:$true] %s460
          %466 = dma.hbm_to_vmem [thread:$0]  %s459, 256, %s461, [#allocation8], 64, 64, 4
        $region16: #{tpu_custom_call.1} parent=11 // pred_fallthru
          _
        // Predicated region
        $region17: #{tpu_custom_call.1} parent=11 // pred_check
          %p467 = pneg %p139
        $region18: #{tpu_custom_call.1} parent=11 // pred_check_branch
          %469 = sbr.rel (%p467) target = $region20
        $region19: #{tpu_custom_call.1} parent=11 // pred_region
          %471 = vsyncadd [#allocation11], 0
          %s473 = sshll.u32 %s4, 4
          %s474 = int_to_ptr.hbm [resolvable:$true] %s473
          %s475 = sshll.u32 [#allocation10], 4
          %s476 = int_to_ptr.vmem [resolvable:$true] %s475
          %478 = dma.hbm_to_vmem [thread:$0]  %s474, 16, %s476, [#allocation11]
        $region20: #{tpu_custom_call.1} parent=11 // pred_fallthru
          _
        // Predicated region
        $region21: #{tpu_custom_call.1} parent=11 // pred_check
          %p479 = pneg %p160
        $region22: #{tpu_custom_call.1} parent=11 // pred_check_branch
          %481 = sbr.rel (%p479) target = $region24
        $region23: #{tpu_custom_call.1} parent=11 // pred_region
          %483 = vsyncadd [#allocation11], 0
          %s484 = sshll.u32 %s5, 4
          %s485 = int_to_ptr.hbm [resolvable:$true] %s484
          %s486 = sshll.u32 [#allocation12], 4
          %s487 = int_to_ptr.vmem [resolvable:$true] %s486
          %492 = dma.hbm_to_vmem [thread:$0]  %s485, 256, %s487, [#allocation11], 64, 64, 4
        $region24: #{tpu_custom_call.1} parent=11 // pred_fallthru
          _
        // Predicated region
        $region25: #{tpu_custom_call.1} parent=11 // pred_check
          %p493 = pneg %p181
        $region26: #{tpu_custom_call.1} parent=11 // pred_check_branch
          %495 = sbr.rel (%p493) target = $region28
        $region27: #{tpu_custom_call.1} parent=11 // pred_region
          %497 = vsyncadd [#allocation14], 0
          %s499 = sshll.u32 %s6, 4
          %s500 = int_to_ptr.hbm [resolvable:$true] %s499
          %s501 = sshll.u32 [#allocation13], 4
          %s502 = int_to_ptr.vmem [resolvable:$true] %s501
          %504 = dma.hbm_to_vmem [thread:$0]  %s500, 16, %s502, [#allocation14]
        $region28: #{tpu_custom_call.1} parent=11 // pred_fallthru
          _
        // Predicated region
        $region29: #{tpu_custom_call.1} parent=11 // pred_check
          %p505 = pneg %p202
        $region30: #{tpu_custom_call.1} parent=11 // pred_check_branch
          %507 = sbr.rel (%p505) target = $region32
        $region31: #{tpu_custom_call.1} parent=11 // pred_region
          %509 = vsyncadd [#allocation14], 0
          %s510 = sshll.u32 %s7, 4
          %s511 = int_to_ptr.hbm [resolvable:$true] %s510
          %s512 = sshll.u32 [#allocation15], 4
          %s513 = int_to_ptr.vmem [resolvable:$true] %s512
          %518 = dma.hbm_to_vmem [thread:$0]  %s511, 2048, %s513, [#allocation14], 128, 128, 8
        $region32: #{tpu_custom_call.1} parent=11 // pred_fallthru
          _
        // Predicated region
        $region33: #{tpu_custom_call.1} parent=11 // pred_check
          %p519 = pneg %p223
        $region34: #{tpu_custom_call.1} parent=11 // pred_check_branch
          %521 = sbr.rel (%p519) target = $region36
        $region35: #{tpu_custom_call.1} parent=11 // pred_region
          %523 = vsyncadd [#allocation17], 0
          %s524 = sshll.u32 %s8, 4
          %s525 = int_to_ptr.hbm [resolvable:$true] %s524
          %s526 = sshll.u32 [#allocation16], 4
          %s527 = int_to_ptr.vmem [resolvable:$true] %s526
          %532 = dma.hbm_to_vmem [thread:$0]  %s525, 2048, %s527, [#allocation17], 128, 128, 8
        $region36: #{tpu_custom_call.1} parent=11 // pred_fallthru
          _
        // Predicated region
        $region37: #{tpu_custom_call.1} parent=11 // pred_check
          %p533 = pneg %p244
        $region38: #{tpu_custom_call.1} parent=11 // pred_check_branch
          %535 = sbr.rel (%p533) target = $region40
        $region39: #{tpu_custom_call.1} parent=11 // pred_region
          _
        $region40: #{tpu_custom_call.1} parent=11 // pred_fallthru
          _
        // Predicated region
        $region41: #{tpu_custom_call.1} parent=11 // pred_check
          %p536 = pneg %p265
        $region42: #{tpu_custom_call.1} parent=11 // pred_check_branch
          %538 = sbr.rel (%p536) target = $region44
        $region43: #{tpu_custom_call.1} parent=11 // pred_region
          _
        $region44: #{tpu_custom_call.1} parent=11 // pred_fallthru
          _
        // Predicated region
        $region45: #{tpu_custom_call.1} parent=11 // pred_check
          %p539 = pneg %p286
        $region46: #{tpu_custom_call.1} parent=11 // pred_check_branch
          %541 = sbr.rel (%p539) target = $region48
        $region47: #{tpu_custom_call.1} parent=11 // pred_region
          _
        $region48: #{tpu_custom_call.1} parent=11 // pred_fallthru
          _
        // Predicated region
        $region49: #{tpu_custom_call.1} parent=11 // pred_check
          %p542 = pneg %p307
        $region50: #{tpu_custom_call.1} parent=11 // pred_check_branch
          %544 = sbr.rel (%p542) target = $region52
        $region51: #{tpu_custom_call.1} parent=11 // pred_region
          %546 = vsyncadd [#allocation17], 0
          %s547 = sshll.u32 %s12, 4
          %s548 = int_to_ptr.hbm [resolvable:$true] %s547
          %s549 = sshll.u32 [#allocation18], 4
          %s550 = int_to_ptr.vmem [resolvable:$true] %s549
          %555 = dma.hbm_to_vmem [thread:$0]  %s548, 4096, %s550, [#allocation17], 128, 128, 8
        $region52: #{tpu_custom_call.1} parent=11 // pred_fallthru
          _
        // Predicated region
        $region53: #{tpu_custom_call.1} parent=11 // pred_check
          %p556 = pneg %p328
        $region54: #{tpu_custom_call.1} parent=11 // pred_check_branch
          %558 = sbr.rel (%p556) target = $region56
        $region55: #{tpu_custom_call.1} parent=11 // pred_region
          _
        $region56: #{tpu_custom_call.1} parent=11 // pred_fallthru
          _
        // Predicated region
        $region57: #{tpu_custom_call.1} parent=11 // pred_check
          %p559 = pneg %p349
        $region58: #{tpu_custom_call.1} parent=11 // pred_check_branch
          %561 = sbr.rel (%p559) target = $region60
        $region59: #{tpu_custom_call.1} parent=11 // pred_region
          _
        $region60: #{tpu_custom_call.1} parent=11 // pred_fallthru
          _
        // Predicated region
        $region61: #{tpu_custom_call.1} parent=11 // pred_check
          %p562 = pneg %p370
        $region62: #{tpu_custom_call.1} parent=11 // pred_check_branch
          %564 = sbr.rel (%p562) target = $region64
        $region63: #{tpu_custom_call.1} parent=11 // pred_region
          _
        $region64: #{tpu_custom_call.1} parent=11 // pred_fallthru
          _
        // Predicated region
        $region65: #{tpu_custom_call.1} parent=11 // pred_check
          %p565 = pneg %p391
        $region66: #{tpu_custom_call.1} parent=11 // pred_check_branch
          %567 = sbr.rel (%p565) target = $region68
        $region67: #{tpu_custom_call.1} parent=11 // pred_region
          %569 = vsyncadd [#allocation20], 0
          %s570 = sshll.u32 %s16, 4
          %s571 = int_to_ptr.hbm [resolvable:$true] %s570
          %s572 = sshll.u32 [#allocation19], 4
          %s573 = int_to_ptr.vmem [resolvable:$true] %s572
          %578 = dma.hbm_to_vmem [thread:$0]  %s571, 2048, %s573, [#allocation20], 64, 64, 4
        $region68: #{tpu_custom_call.1} parent=11 // pred_fallthru
          _
        // Predicated region
        $region69: #{tpu_custom_call.1} parent=11 // pred_check
          %p579 = pneg %p412
        $region70: #{tpu_custom_call.1} parent=11 // pred_check_branch
          %581 = sbr.rel (%p579) target = $region72
        $region71: #{tpu_custom_call.1} parent=11 // pred_region
          _
        $region72: #{tpu_custom_call.1} parent=11 // pred_fallthru
          _
      $region12: #{tpu_custom_call.1} parent=5 // pred_fallthru
        _
      %p582 = scmp.lt.s32.totalorder %s45, 2
      // Predicated region
      $region73: #{tpu_custom_call.1} parent=5 // pred_check
        %p583 = pneg %p582
      $region74: #{tpu_custom_call.1} parent=5 // pred_check_branch
        %585 = sbr.rel (%p583) target = $region76
      $region75: #{tpu_custom_call.1} parent=5 // pred_region
        // Predicated region
        $region77: #{tpu_custom_call.1} parent=75 // pred_check
          %p586 = pneg %p65
        $region78: #{tpu_custom_call.1} parent=75 // pred_check_branch
          %588 = sbr.rel (%p586) target = $region80
        $region79: #{tpu_custom_call.1} parent=75 // pred_region
          %s589 = sand.u32 %s55, 1
          %s590 = scalar_lea.sflag [#allocation5], %s589
          %s591 = sand.u32 %s55, 1
          %s592 = smul.addr %s591, 8
          %s593 = scalar_lea.vmem [#allocation4], %s592
          %595 = vsyncadd %s590, 0
          %s596 = smul.addr %s45, 8
          %s597 = scalar_lea.hbm %s1, %s596
          %s599 = sshll.u32 %s597, 4
          %s600 = int_to_ptr.hbm [resolvable:$true] %s599
          %s601 = sshll.u32 %s593, 4
          %s602 = int_to_ptr.vmem [resolvable:$true] %s601
          %604 = dma.hbm_to_vmem [thread:$0]  %s600, 128, %s602, %s590
        $region80: #{tpu_custom_call.1} parent=75 // pred_fallthru
          _
        // Predicated region
        $region81: #{tpu_custom_call.1} parent=75 // pred_check
          %p605 = pneg %p91
        $region82: #{tpu_custom_call.1} parent=75 // pred_check_branch
          %607 = sbr.rel (%p605) target = $region84
        $region83: #{tpu_custom_call.1} parent=75 // pred_region
          %s608 = sand.u32 %s45, 1
          %s609 = scalar_lea.sflag [#allocation8], %s608
          %s610 = sand.u32 %s81, 1
          %s611 = smul.addr %s610, 8
          %s612 = scalar_lea.vmem [#allocation7], %s611
          %614 = vsyncadd %s609, 0
          %s615 = smul.addr %s45, 8
          %s616 = scalar_lea.hbm %s2, %s615
          %s618 = sshll.u32 %s616, 4
          %s619 = int_to_ptr.hbm [resolvable:$true] %s618
          %s620 = sshll.u32 %s612, 4
          %s621 = int_to_ptr.vmem [resolvable:$true] %s620
          %623 = dma.hbm_to_vmem [thread:$0]  %s619, 128, %s621, %s609
        $region84: #{tpu_custom_call.1} parent=75 // pred_fallthru
          _
      $region76: #{tpu_custom_call.1} parent=5 // pred_fallthru
        _
      %p624 = scmp.le.s32.totalorder 1, %s45
      %p625 = scmp.lt.s32.totalorder %s45, 3
      %p626 = pnand %p624, %p625
      %p627 = pneg %p626
      // Predicated region
      $region85: #{tpu_custom_call.1} parent=5 // pred_check
        _
      $region86: #{tpu_custom_call.1} parent=5 // pred_check_branch
        %629 = sbr.rel (%p626) target = $region88
      $region87: #{tpu_custom_call.1} parent=5 // pred_region
        %s630 = ssub.s32 %s45, 1
        %s631 = sand.u32 %s58, 1
        %s632 = scalar_lea.sflag [#allocation5], %s631
        %s633 = sand.u32 %s58, 1
        %s634 = smul.addr %s633, 8
        %s635 = scalar_lea.vmem [#allocation4], %s634
        // Predicated region
        $region89: #{tpu_custom_call.1} parent=87 // pred_check
          %p636 = pneg %p71
        $region90: #{tpu_custom_call.1} parent=87 // pred_check_branch
          %638 = sbr.rel (%p636) target = $region92
        $region91: #{tpu_custom_call.1} parent=87 // pred_region
          %640 = dma.done %s632, 128
        $region92: #{tpu_custom_call.1} parent=87 // pred_fallthru
          _
        %s641 = sand.u32 %s50, 1
        %s642 = scalar_lea.sflag [#allocation8], %s641
        %s643 = sand.u32 %s84, 1
        %s644 = smul.addr %s643, 8
        %s645 = scalar_lea.vmem [#allocation7], %s644
        // Predicated region
        $region93: #{tpu_custom_call.1} parent=87 // pred_check
          %p646 = pneg %p97
        $region94: #{tpu_custom_call.1} parent=87 // pred_check_branch
          %648 = sbr.rel (%p646) target = $region96
        $region95: #{tpu_custom_call.1} parent=87 // pred_region
          %650 = dma.done %s642, 128
        $region96: #{tpu_custom_call.1} parent=87 // pred_fallthru
          _
        // Predicated region
        $region97: #{tpu_custom_call.1} parent=87 // pred_check
          %p651 = pneg %p118
        $region98: #{tpu_custom_call.1} parent=87 // pred_check_branch
          %653 = sbr.rel (%p651) target = $region100
        $region99: #{tpu_custom_call.1} parent=87 // pred_region
          %655 = dma.done [#allocation8], 256
        $region100: #{tpu_custom_call.1} parent=87 // pred_fallthru
          _
        // Predicated region
        $region101: #{tpu_custom_call.1} parent=87 // pred_check
          %p656 = pneg %p139
        $region102: #{tpu_custom_call.1} parent=87 // pred_check_branch
          %658 = sbr.rel (%p656) target = $region104
        $region103: #{tpu_custom_call.1} parent=87 // pred_region
          %660 = dma.done [#allocation11], 16
        $region104: #{tpu_custom_call.1} parent=87 // pred_fallthru
          _
        // Predicated region
        $region105: #{tpu_custom_call.1} parent=87 // pred_check
          %p661 = pneg %p160
        $region106: #{tpu_custom_call.1} parent=87 // pred_check_branch
          %663 = sbr.rel (%p661) target = $region108
        $region107: #{tpu_custom_call.1} parent=87 // pred_region
          %665 = dma.done [#allocation11], 256
        $region108: #{tpu_custom_call.1} parent=87 // pred_fallthru
          _
        // Predicated region
        $region109: #{tpu_custom_call.1} parent=87 // pred_check
          %p666 = pneg %p181
        $region110: #{tpu_custom_call.1} parent=87 // pred_check_branch
          %668 = sbr.rel (%p666) target = $region112
        $region111: #{tpu_custom_call.1} parent=87 // pred_region
          %670 = dma.done [#allocation14], 16
        $region112: #{tpu_custom_call.1} parent=87 // pred_fallthru
          _
        // Predicated region
        $region113: #{tpu_custom_call.1} parent=87 // pred_check
          %p671 = pneg %p202
        $region114: #{tpu_custom_call.1} parent=87 // pred_check_branch
          %673 = sbr.rel (%p671) target = $region116
        $region115: #{tpu_custom_call.1} parent=87 // pred_region
          %675 = dma.done [#allocation14], 2048
        $region116: #{tpu_custom_call.1} parent=87 // pred_fallthru
          _
        // Predicated region
        $region117: #{tpu_custom_call.1} parent=87 // pred_check
          %p676 = pneg %p223
        $region118: #{tpu_custom_call.1} parent=87 // pred_check_branch
          %678 = sbr.rel (%p676) target = $region120
        $region119: #{tpu_custom_call.1} parent=87 // pred_region
          %680 = dma.done [#allocation17], 2048
        $region120: #{tpu_custom_call.1} parent=87 // pred_fallthru
          _
        // Predicated region
        $region121: #{tpu_custom_call.1} parent=87 // pred_check
          %p681 = pneg %p307
        $region122: #{tpu_custom_call.1} parent=87 // pred_check_branch
          %683 = sbr.rel (%p681) target = $region124
        $region123: #{tpu_custom_call.1} parent=87 // pred_region
          %685 = dma.done [#allocation17], 4096
        $region124: #{tpu_custom_call.1} parent=87 // pred_fallthru
          _
        // Predicated region
        $region125: #{tpu_custom_call.1} parent=87 // pred_check
          %p686 = pneg %p391
        $region126: #{tpu_custom_call.1} parent=87 // pred_check_branch
          %688 = sbr.rel (%p686) target = $region128
        $region127: #{tpu_custom_call.1} parent=87 // pred_region
          %690 = dma.done [#allocation20], 2048
        $region128: #{tpu_custom_call.1} parent=87 // pred_fallthru
          _
        %s691 = sand.u32 %s58, 1
        %s692 = scalar_lea.sflag [#allocation5], %s691
        %s693 = sand.u32 %s58, 1
        %s694 = smul.addr %s693, 8
        %s695 = scalar_lea.vmem [#allocation4], %s694
        %p696 = pneg %p71
        %p697 = pneg %p68
        %s698 = sand.u32 %s50, 1
        %s699 = scalar_lea.sflag [#allocation8], %s698
        %s700 = sand.u32 %s84, 1
        %s701 = smul.addr %s700, 8
        %s702 = scalar_lea.vmem [#allocation7], %s701
        %p703 = pneg %p97
        %p704 = pneg %p94
        %p705 = pneg %p118
        %p706 = pneg %p115
        %p707 = pneg %p139
        %p708 = pneg %p136
        %p709 = pneg %p160
        %p710 = pneg %p157
        %p711 = pneg %p181
        %p712 = pneg %p178
        %p713 = pneg %p202
        %p714 = pneg %p199
        %p715 = pneg %p223
        %p716 = pneg %p220
        %p717 = pneg %p244
        %p718 = pneg %p241
        %p719 = pneg %p265
        %p720 = pneg %p262
        %p721 = pneg %p286
        %p722 = pneg %p283
        %p723 = pneg %p307
        %p724 = pneg %p304
        %p725 = pneg %p328
        %p726 = pneg %p325
        %p727 = pneg %p349
        %p728 = pneg %p346
        %p729 = pneg %p370
        %p730 = pneg %p367
        %p731 = pneg %p391
        %p732 = pneg %p388
        %p733 = pneg %p412
        %p734 = pneg %p409
        %p735 = pneg %p438
        %p736 = pneg %p435
        %s737 = sand.u32 %s425, 1
        %s738 = scalar_lea.sflag [#allocation6], %s737
        %s739 = sand.u32 %s425, 1
        %s740 = smul.addr %s739, 8
        %s741 = scalar_lea.vmem [#allocation21], %s740
        %s743 = sld [smem:[#allocation3 + %s50]]
        %v744 = vlaneseq
        %v745 = vshrl.u32 %v744, 7
        %v746 = vstv %s743
        %vm747 = vcmp.lt.s32.totalorder %v745, %v746
        %v748 = vsel %vm747, 1, 0
        %v749 = vcvt.s32.f32 %v748
        %s750 = scvt.s32.f32 %s743
        %v751 = vstv %s750
        %v752 = vrcp.pop %v751
        %v753 = vmul.f32 %v751, %v752
        %v754 = vsub.f32 1.0, %v753
        %v755 = vmul.f32 %v752, %v754
        %v756 = vadd.f32 %v752, %v755
        %vm757 = vweird.f32 %v751
        %vm758 = vweird.f32 %v752
        %vm759 = vmor %vm757, %vm758
        %v760 = vsel %vm759, %v752, %v756
        %v761 = vand.u32 2147483647, %v751
        %vm762 = vcmp.eq.f32.partialorder %v761, 8.507059e+37
        %v763 = vand.u32 %v751, 2147483648
        %v764 = vor.u32 1.1754944e-38, %v763
        %v765 = vsel %vm762, %v764, %v760
        %s766 = vtos %v765
        %v767 = vld [vmem:[%s635] sm:$0xff]
        %v768 = vpack.c.bf16 %v767, %v767
        %v769 = vld [vmem:[#allocation9] sm:$0xf]
        %v770 = vld [vmem:[#allocation9 + $0x4] sm:$0xf]
        %v771 = vld [vmem:[#allocation9 + $0x8] sm:$0xf]
        %v772 = vld [vmem:[#allocation9 + $0xc] sm:$0xf]
        %v773 = vld [vmem:[#allocation10] sm:$0x1]
        %v775 = vperm.slane %v773, 0
        %v781 = vunpack.c.l.b16 %v769
        %v782 = vunpack.c.l.b16 %v770
        %v783 = vunpack.c.l.b16 %v771
        %v784 = vunpack.c.l.b16 %v772
        %v785 = vpack.c.b16 %v782, %v781
        %v786 = vpack.c.b16 %v784, %v783
        %vm789 = vcmask 261120
        %v791 = vsel %vm789, %v768, 0
        %793 = vmatpush.bf16.msra.mxu0 0
        %794 = vmatpush.bf16.msra.mxu0 0
        %795 = vmatpush.bf16.msra.mxu0 0
        %796 = vmatpush.bf16.msra.mxu0 0
        %797 = vmatpush.bf16.msra.mxu0 0
        %798 = vmatpush.bf16.msra.mxu0 0
        %799 = vmatpush.bf16.msra.mxu0 %v786
        %800 = vmatpush.bf16.msra.mxu0 %v785
        %801 = vmatmul.bf16.gmra.mxu0 %v791
        %v802 = vpop.f32.mrf.mxu0
        %v803 = vadd.f32 %v775, %v802
        %v804 = vpop.f32.mrf.mxu0
        %805 = vdwg.mxu0
        %v806 = vld [vmem:[%s645] sm:$0xff]
        %v807 = vpack.c.bf16 %v806, %v806
        %v808 = vld [vmem:[#allocation12] sm:$0xf]
        %v809 = vld [vmem:[#allocation12 + $0x4] sm:$0xf]
        %v810 = vld [vmem:[#allocation12 + $0x8] sm:$0xf]
        %v811 = vld [vmem:[#allocation12 + $0xc] sm:$0xf]
        %v812 = vld [vmem:[#allocation13] sm:$0x1]
        %v814 = vperm.slane %v812, 0
        %v820 = vunpack.c.l.b16 %v808
        %v821 = vunpack.c.l.b16 %v809
        %v822 = vunpack.c.l.b16 %v810
        %v823 = vunpack.c.l.b16 %v811
        %v824 = vpack.c.b16 %v821, %v820
        %v825 = vpack.c.b16 %v823, %v822
        %v829 = vsel %vm789, %v807, 0
        %831 = vmatpush.bf16.msra.mxu0 0
        %832 = vmatpush.bf16.msra.mxu0 0
        %833 = vmatpush.bf16.msra.mxu0 0
        %834 = vmatpush.bf16.msra.mxu0 0
        %835 = vmatpush.bf16.msra.mxu0 0
        %836 = vmatpush.bf16.msra.mxu0 0
        %837 = vmatpush.bf16.msra.mxu0 %v825
        %838 = vmatpush.bf16.msra.mxu0 %v824
        %839 = vmatmul.bf16.gmra.mxu0 %v829
        %v840 = vpop.f32.mrf.mxu0
        %v841 = vadd.f32 %v814, %v840
        %v842 = vpop.f32.mrf.mxu0
        %843 = vdwg.mxu0
        %v844 = vpack.c.bf16 %v803, %v803
        %v845 = vld [vmem:[#allocation15] sm:$0xff]
        %v846 = vld [vmem:[#allocation15 + $0x8] sm:$0xff]
        %v847 = vld [vmem:[#allocation15 + $0x10] sm:$0xff]
        %v848 = vld [vmem:[#allocation15 + $0x18] sm:$0xff]
        %v849 = vld [vmem:[#allocation15 + $0x20] sm:$0xff]
        %v850 = vld [vmem:[#allocation15 + $0x28] sm:$0xff]
        %v851 = vld [vmem:[#allocation15 + $0x30] sm:$0xff]
        %v852 = vld [vmem:[#allocation15 + $0x38] sm:$0xff]
        %v853 = vld [vmem:[#allocation15 + $0x40] sm:$0xff]
        %v854 = vld [vmem:[#allocation15 + $0x48] sm:$0xff]
        %v855 = vld [vmem:[#allocation15 + $0x50] sm:$0xff]
        %v856 = vld [vmem:[#allocation15 + $0x58] sm:$0xff]
        %v857 = vld [vmem:[#allocation15 + $0x60] sm:$0xff]
        %v858 = vld [vmem:[#allocation15 + $0x68] sm:$0xff]
        %v859 = vld [vmem:[#allocation15 + $0x70] sm:$0xff]
        %v860 = vld [vmem:[#allocation15 + $0x78] sm:$0xff]
        %v861 = vpack.c.bf16 %v841, %v841
        %v862 = vld [vmem:[#allocation16] sm:$0xff]
        %v863 = vld [vmem:[#allocation16 + $0x8] sm:$0xff]
        %v864 = vld [vmem:[#allocation16 + $0x10] sm:$0xff]
        %v865 = vld [vmem:[#allocation16 + $0x18] sm:$0xff]
        %v866 = vld [vmem:[#allocation16 + $0x20] sm:$0xff]
        %v867 = vld [vmem:[#allocation16 + $0x28] sm:$0xff]
        %v868 = vld [vmem:[#allocation16 + $0x30] sm:$0xff]
        %v869 = vld [vmem:[#allocation16 + $0x38] sm:$0xff]
        %v870 = vld [vmem:[#allocation16 + $0x40] sm:$0xff]
        %v871 = vld [vmem:[#allocation16 + $0x48] sm:$0xff]
        %v872 = vld [vmem:[#allocation16 + $0x50] sm:$0xff]
        %v873 = vld [vmem:[#allocation16 + $0x58] sm:$0xff]
        %v874 = vld [vmem:[#allocation16 + $0x60] sm:$0xff]
        %v875 = vld [vmem:[#allocation16 + $0x68] sm:$0xff]
        %v876 = vld [vmem:[#allocation16 + $0x70] sm:$0xff]
        %v877 = vld [vmem:[#allocation16 + $0x78] sm:$0xff]
        %v894 = vunpack.c.l.b16 %v862
        %v895 = vunpack.c.h.b16 %v862
        %v896 = vunpack.c.l.b16 %v863
        %v897 = vunpack.c.h.b16 %v863
        %v898 = vunpack.c.l.b16 %v864
        %v899 = vunpack.c.h.b16 %v864
        %v900 = vunpack.c.l.b16 %v865
        %v901 = vunpack.c.h.b16 %v865
        %v902 = vunpack.c.l.b16 %v866
        %v903 = vunpack.c.h.b16 %v866
        %v904 = vunpack.c.l.b16 %v867
        %v905 = vunpack.c.h.b16 %v867
        %v906 = vunpack.c.l.b16 %v868
        %v907 = vunpack.c.h.b16 %v868
        %v908 = vunpack.c.l.b16 %v869
        %v909 = vunpack.c.h.b16 %v869
        %v910 = vunpack.c.l.b16 %v870
        %v911 = vunpack.c.h.b16 %v870
        %v912 = vunpack.c.l.b16 %v871
        %v913 = vunpack.c.h.b16 %v871
        %v914 = vunpack.c.l.b16 %v872
        %v915 = vunpack.c.h.b16 %v872
        %v916 = vunpack.c.l.b16 %v873
        %v917 = vunpack.c.h.b16 %v873
        %v918 = vunpack.c.l.b16 %v874
        %v919 = vunpack.c.h.b16 %v874
        %v920 = vunpack.c.l.b16 %v875
        %v921 = vunpack.c.h.b16 %v875
        %v922 = vunpack.c.l.b16 %v876
        %v923 = vunpack.c.h.b16 %v876
        %v924 = vunpack.c.l.b16 %v877
        %v925 = vunpack.c.h.b16 %v877
        %v926 = vpack.c.b16 %v896, %v894
        %v927 = vpack.c.b16 %v897, %v895
        %v928 = vpack.c.b16 %v900, %v898
        %v929 = vpack.c.b16 %v901, %v899
        %v930 = vpack.c.b16 %v904, %v902
        %v931 = vpack.c.b16 %v905, %v903
        %v932 = vpack.c.b16 %v908, %v906
        %v933 = vpack.c.b16 %v909, %v907
        %v934 = vpack.c.b16 %v912, %v910
        %v935 = vpack.c.b16 %v913, %v911
        %v936 = vpack.c.b16 %v916, %v914
        %v937 = vpack.c.b16 %v917, %v915
        %v938 = vpack.c.b16 %v920, %v918
        %v939 = vpack.c.b16 %v921, %v919
        %v940 = vpack.c.b16 %v924, %v922
        %v941 = vpack.c.b16 %v925, %v923
        %958 = vmatpush.bf16.msra.mxu0 %v940
        %959 = vmatpush.bf16.msra.mxu0 %v938
        %960 = vmatpush.bf16.msra.mxu0 %v936
        %961 = vmatpush.bf16.msra.mxu0 %v934
        %962 = vmatpush.bf16.msra.mxu0 %v932
        %963 = vmatpush.bf16.msra.mxu0 %v930
        %964 = vmatpush.bf16.msra.mxu0 %v928
        %965 = vmatpush.bf16.msra.mxu0 %v926
        %966 = vmatmul.bf16.gmra.mxu0 %v861
        %v967 = vpop.f32.mrf.mxu0
        %v968 = vadd.f32 0.0, %v967
        %v969 = vpop.f32.mrf.mxu0
        %970 = vdwg.mxu0
        %971 = vmatpush.bf16.msra.mxu0 %v941
        %972 = vmatpush.bf16.msra.mxu0 %v939
        %973 = vmatpush.bf16.msra.mxu0 %v937
        %974 = vmatpush.bf16.msra.mxu0 %v935
        %975 = vmatpush.bf16.msra.mxu0 %v933
        %976 = vmatpush.bf16.msra.mxu0 %v931
        %977 = vmatpush.bf16.msra.mxu0 %v929
        %978 = vmatpush.bf16.msra.mxu0 %v927
        %979 = vmatmul.bf16.gmra.mxu0 %v861
        %v980 = vpop.f32.mrf.mxu0
        %v981 = vadd.f32 0.0, %v980
        %v982 = vpop.f32.mrf.mxu0
        %983 = vdwg.mxu0
        %v1000 = vunpack.c.l.b16 %v845
        %v1001 = vunpack.c.h.b16 %v845
        %v1002 = vunpack.c.l.b16 %v846
        %v1003 = vunpack.c.h.b16 %v846
        %v1004 = vunpack.c.l.b16 %v847
        %v1005 = vunpack.c.h.b16 %v847
        %v1006 = vunpack.c.l.b16 %v848
        %v1007 = vunpack.c.h.b16 %v848
        %v1008 = vunpack.c.l.b16 %v849
        %v1009 = vunpack.c.h.b16 %v849
        %v1010 = vunpack.c.l.b16 %v850
        %v1011 = vunpack.c.h.b16 %v850
        %v1012 = vunpack.c.l.b16 %v851
        %v1013 = vunpack.c.h.b16 %v851
        %v1014 = vunpack.c.l.b16 %v852
        %v1015 = vunpack.c.h.b16 %v852
        %v1016 = vunpack.c.l.b16 %v853
        %v1017 = vunpack.c.h.b16 %v853
        %v1018 = vunpack.c.l.b16 %v854
        %v1019 = vunpack.c.h.b16 %v854
        %v1020 = vunpack.c.l.b16 %v855
        %v1021 = vunpack.c.h.b16 %v855
        %v1022 = vunpack.c.l.b16 %v856
        %v1023 = vunpack.c.h.b16 %v856
        %v1024 = vunpack.c.l.b16 %v857
        %v1025 = vunpack.c.h.b16 %v857
        %v1026 = vunpack.c.l.b16 %v858
        %v1027 = vunpack.c.h.b16 %v858
        %v1028 = vunpack.c.l.b16 %v859
        %v1029 = vunpack.c.h.b16 %v859
        %v1030 = vunpack.c.l.b16 %v860
        %v1031 = vunpack.c.h.b16 %v860
        %v1032 = vpack.c.b16 %v1002, %v1000
        %v1033 = vpack.c.b16 %v1003, %v1001
        %v1034 = vpack.c.b16 %v1006, %v1004
        %v1035 = vpack.c.b16 %v1007, %v1005
        %v1036 = vpack.c.b16 %v1010, %v1008
        %v1037 = vpack.c.b16 %v1011, %v1009
        %v1038 = vpack.c.b16 %v1014, %v1012
        %v1039 = vpack.c.b16 %v1015, %v1013
        %v1040 = vpack.c.b16 %v1018, %v1016
        %v1041 = vpack.c.b16 %v1019, %v1017
        %v1042 = vpack.c.b16 %v1022, %v1020
        %v1043 = vpack.c.b16 %v1023, %v1021
        %v1044 = vpack.c.b16 %v1026, %v1024
        %v1045 = vpack.c.b16 %v1027, %v1025
        %v1046 = vpack.c.b16 %v1030, %v1028
        %v1047 = vpack.c.b16 %v1031, %v1029
        %1064 = vmatpush.bf16.msra.mxu0 %v1046
        %1065 = vmatpush.bf16.msra.mxu0 %v1044
        %1066 = vmatpush.bf16.msra.mxu0 %v1042
        %1067 = vmatpush.bf16.msra.mxu0 %v1040
        %1068 = vmatpush.bf16.msra.mxu0 %v1038
        %1069 = vmatpush.bf16.msra.mxu0 %v1036
        %1070 = vmatpush.bf16.msra.mxu0 %v1034
        %1071 = vmatpush.bf16.msra.mxu0 %v1032
        %1072 = vmatmul.bf16.gmra.mxu0 %v844
        %v1073 = vpop.f32.mrf.mxu0
        %v1074 = vadd.f32 %v968, %v1073
        %v1075 = vpop.f32.mrf.mxu0
        %1076 = vdwg.mxu0
        %1077 = vmatpush.bf16.msra.mxu0 %v1047
        %1078 = vmatpush.bf16.msra.mxu0 %v1045
        %1079 = vmatpush.bf16.msra.mxu0 %v1043
        %1080 = vmatpush.bf16.msra.mxu0 %v1041
        %1081 = vmatpush.bf16.msra.mxu0 %v1039
        %1082 = vmatpush.bf16.msra.mxu0 %v1037
        %1083 = vmatpush.bf16.msra.mxu0 %v1035
        %1084 = vmatpush.bf16.msra.mxu0 %v1033
        %1085 = vmatmul.bf16.gmra.mxu0 %v844
        %v1086 = vpop.f32.mrf.mxu0
        %v1087 = vadd.f32 %v981, %v1086
        %v1088 = vpop.f32.mrf.mxu0
        %1089 = vdwg.mxu0
        %v1090 = vld [vmem:[%s9] sm:$0x3]
        %v1092 = vperm.slane %v1090, 0
        %v1093 = vperm.slane %v1090, 1
        %v1096 = vadd.f32 %v1074, %v1092
        %v1097 = vadd.f32 %v1087, %v1093
        %v1098 = vld [vmem:[%s10] sm:$0x3]
        %v1099 = vld [vmem:[%s11] sm:$0x3]
        %v1100 = vmul.f32 %v1096, %v749
        %v1101 = vmul.f32 %v1097, %v749
        %v1102 = vrot.slane %v1100, 4
        %v1103 = vadd.f32 %v1100, %v1102
        %v1104 = vrot.slane %v1103, 2
        %v1105 = vadd.f32 %v1103, %v1104
        %v1106 = vrot.slane %v1105, 1
        %v1107 = vadd.f32 %v1105, %v1106
        %v1108 = vrot.slane %v1101, 4
        %v1109 = vadd.f32 %v1101, %v1108
        %v1110 = vrot.slane %v1109, 2
        %v1111 = vadd.f32 %v1109, %v1110
        %v1112 = vrot.slane %v1111, 1
        %v1113 = vadd.f32 %v1111, %v1112
        %v1114 = vstv %s766
        %v1115 = vmul.f32 %v1107, %v1114
        %v1116 = vmul.f32 %v1113, %v1114
        %v1117 = vsub.f32 %v1096, %v1115
        %v1118 = vsub.f32 %v1097, %v1116
        %v1119 = vmul.f32 %v1117, %v749
        %v1120 = vmul.f32 %v1118, %v749
        %v1121 = vmul.f32 %v1119, %v1119
        %v1122 = vmul.f32 %v1120, %v1120
        %v1123 = vrot.slane %v1121, 4
        %v1124 = vadd.f32 %v1121, %v1123
        %v1125 = vrot.slane %v1124, 2
        %v1126 = vadd.f32 %v1124, %v1125
        %v1127 = vrot.slane %v1126, 1
        %v1128 = vadd.f32 %v1126, %v1127
        %v1129 = vrot.slane %v1122, 4
        %v1130 = vadd.f32 %v1122, %v1129
        %v1131 = vrot.slane %v1130, 2
        %v1132 = vadd.f32 %v1130, %v1131
        %v1133 = vrot.slane %v1132, 1
        %v1134 = vadd.f32 %v1132, %v1133
        %v1135 = vmul.f32 %v1128, %v1114
        %v1136 = vmul.f32 %v1134, %v1114
        %v1137 = vadd.f32 %v1135, 1e-05
        %v1138 = vadd.f32 %v1136, 1e-05
        %v1139 = vrsqrt.pop %v1137
        %v1140 = vmul.f32 %v1139, %v1137
        %v1141 = vmul.f32 %v1140, %v1139
        %v1142 = vmul.f32 0.5, %v1141
        %v1143 = vsub.f32 1.5, %v1142
        %v1144 = vmul.f32 %v1139, %v1143
        %vm1145 = vweird.f32 %v1137
        %vm1146 = vweird.f32 %v1139
        %vm1147 = vmor %vm1145, %vm1146
        %v1148 = vsel %vm1147, %v1139, %v1144
        %v1149 = vrsqrt.pop %v1138
        %v1150 = vmul.f32 %v1149, %v1138
        %v1151 = vmul.f32 %v1150, %v1149
        %v1152 = vmul.f32 0.5, %v1151
        %v1153 = vsub.f32 1.5, %v1152
        %v1154 = vmul.f32 %v1149, %v1153
        %vm1155 = vweird.f32 %v1138
        %vm1156 = vweird.f32 %v1149
        %vm1157 = vmor %vm1155, %vm1156
        %v1158 = vsel %vm1157, %v1149, %v1154
        %v1159 = vmul.f32 %v1117, %v1148
        %v1160 = vmul.f32 %v1118, %v1158
        %v1162 = vperm.slane %v1098, 0
        %v1163 = vperm.slane %v1098, 1
        %v1166 = vmul.f32 %v1159, %v1162
        %v1167 = vmul.f32 %v1160, %v1163
        %v1169 = vperm.slane %v1099, 0
        %v1170 = vperm.slane %v1099, 1
        %v1173 = vadd.f32 %v1166, %v1169
        %v1174 = vadd.f32 %v1167, %v1170
        %v1175 = vmax.f32 %v1173, 0.0
        %v1176 = vmax.f32 %v1174, 0.0
        %v1177 = vpack.c.bf16 %v1175, %v1175
        %v1178 = vpack.c.bf16 %v1176, %v1176
        %v1179 = vld [vmem:[#allocation18] sm:$0xff]
        %v1180 = vld [vmem:[#allocation18 + $0x8] sm:$0xff]
        %v1181 = vld [vmem:[#allocation18 + $0x10] sm:$0xff]
        %v1182 = vld [vmem:[#allocation18 + $0x18] sm:$0xff]
        %v1183 = vld [vmem:[#allocation18 + $0x20] sm:$0xff]
        %v1184 = vld [vmem:[#allocation18 + $0x28] sm:$0xff]
        %v1185 = vld [vmem:[#allocation18 + $0x30] sm:$0xff]
        %v1186 = vld [vmem:[#allocation18 + $0x38] sm:$0xff]
        %v1187 = vld [vmem:[#allocation18 + $0x40] sm:$0xff]
        %v1188 = vld [vmem:[#allocation18 + $0x48] sm:$0xff]
        %v1189 = vld [vmem:[#allocation18 + $0x50] sm:$0xff]
        %v1190 = vld [vmem:[#allocation18 + $0x58] sm:$0xff]
        %v1191 = vld [vmem:[#allocation18 + $0x60] sm:$0xff]
        %v1192 = vld [vmem:[#allocation18 + $0x68] sm:$0xff]
        %v1193 = vld [vmem:[#allocation18 + $0x70] sm:$0xff]
        %v1194 = vld [vmem:[#allocation18 + $0x78] sm:$0xff]
        %v1195 = vld [vmem:[#allocation18 + $0x80] sm:$0xff]
        %v1196 = vld [vmem:[#allocation18 + $0x88] sm:$0xff]
        %v1197 = vld [vmem:[#allocation18 + $0x90] sm:$0xff]
        %v1198 = vld [vmem:[#allocation18 + $0x98] sm:$0xff]
        %v1199 = vld [vmem:[#allocation18 + $0xa0] sm:$0xff]
        %v1200 = vld [vmem:[#allocation18 + $0xa8] sm:$0xff]
        %v1201 = vld [vmem:[#allocation18 + $0xb0] sm:$0xff]
        %v1202 = vld [vmem:[#allocation18 + $0xb8] sm:$0xff]
        %v1203 = vld [vmem:[#allocation18 + $0xc0] sm:$0xff]
        %v1204 = vld [vmem:[#allocation18 + $0xc8] sm:$0xff]
        %v1205 = vld [vmem:[#allocation18 + $0xd0] sm:$0xff]
        %v1206 = vld [vmem:[#allocation18 + $0xd8] sm:$0xff]
        %v1207 = vld [vmem:[#allocation18 + $0xe0] sm:$0xff]
        %v1208 = vld [vmem:[#allocation18 + $0xe8] sm:$0xff]
        %v1209 = vld [vmem:[#allocation18 + $0xf0] sm:$0xff]
        %v1210 = vld [vmem:[#allocation18 + $0xf8] sm:$0xff]
        %v1211 = vld [vmem:[%s13] sm:$0x3]
        %v1213 = vperm.slane %v1211, 0
        %v1214 = vperm.slane %v1211, 1
        %v1249 = vunpack.c.l.b16 %v1179
        %v1250 = vunpack.c.h.b16 %v1179
        %v1251 = vunpack.c.l.b16 %v1180
        %v1252 = vunpack.c.h.b16 %v1180
        %v1253 = vunpack.c.l.b16 %v1181
        %v1254 = vunpack.c.h.b16 %v1181
        %v1255 = vunpack.c.l.b16 %v1182
        %v1256 = vunpack.c.h.b16 %v1182
        %v1257 = vunpack.c.l.b16 %v1183
        %v1258 = vunpack.c.h.b16 %v1183
        %v1259 = vunpack.c.l.b16 %v1184
        %v1260 = vunpack.c.h.b16 %v1184
        %v1261 = vunpack.c.l.b16 %v1185
        %v1262 = vunpack.c.h.b16 %v1185
        %v1263 = vunpack.c.l.b16 %v1186
        %v1264 = vunpack.c.h.b16 %v1186
        %v1265 = vunpack.c.l.b16 %v1187
        %v1266 = vunpack.c.h.b16 %v1187
        %v1267 = vunpack.c.l.b16 %v1188
        %v1268 = vunpack.c.h.b16 %v1188
        %v1269 = vunpack.c.l.b16 %v1189
        %v1270 = vunpack.c.h.b16 %v1189
        %v1271 = vunpack.c.l.b16 %v1190
        %v1272 = vunpack.c.h.b16 %v1190
        %v1273 = vunpack.c.l.b16 %v1191
        %v1274 = vunpack.c.h.b16 %v1191
        %v1275 = vunpack.c.l.b16 %v1192
        %v1276 = vunpack.c.h.b16 %v1192
        %v1277 = vunpack.c.l.b16 %v1193
        %v1278 = vunpack.c.h.b16 %v1193
        %v1279 = vunpack.c.l.b16 %v1194
        %v1280 = vunpack.c.h.b16 %v1194
        %v1281 = vunpack.c.l.b16 %v1195
        %v1282 = vunpack.c.h.b16 %v1195
        %v1283 = vunpack.c.l.b16 %v1196
        %v1284 = vunpack.c.h.b16 %v1196
        %v1285 = vunpack.c.l.b16 %v1197
        %v1286 = vunpack.c.h.b16 %v1197
        %v1287 = vunpack.c.l.b16 %v1198
        %v1288 = vunpack.c.h.b16 %v1198
        %v1289 = vunpack.c.l.b16 %v1199
        %v1290 = vunpack.c.h.b16 %v1199
        %v1291 = vunpack.c.l.b16 %v1200
        %v1292 = vunpack.c.h.b16 %v1200
        %v1293 = vunpack.c.l.b16 %v1201
        %v1294 = vunpack.c.h.b16 %v1201
        %v1295 = vunpack.c.l.b16 %v1202
        %v1296 = vunpack.c.h.b16 %v1202
        %v1297 = vunpack.c.l.b16 %v1203
        %v1298 = vunpack.c.h.b16 %v1203
        %v1299 = vunpack.c.l.b16 %v1204
        %v1300 = vunpack.c.h.b16 %v1204
        %v1301 = vunpack.c.l.b16 %v1205
        %v1302 = vunpack.c.h.b16 %v1205
        %v1303 = vunpack.c.l.b16 %v1206
        %v1304 = vunpack.c.h.b16 %v1206
        %v1305 = vunpack.c.l.b16 %v1207
        %v1306 = vunpack.c.h.b16 %v1207
        %v1307 = vunpack.c.l.b16 %v1208
        %v1308 = vunpack.c.h.b16 %v1208
        %v1309 = vunpack.c.l.b16 %v1209
        %v1310 = vunpack.c.h.b16 %v1209
        %v1311 = vunpack.c.l.b16 %v1210
        %v1312 = vunpack.c.h.b16 %v1210
        %v1313 = vpack.c.b16 %v1251, %v1249
        %v1314 = vpack.c.b16 %v1252, %v1250
        %v1315 = vpack.c.b16 %v1255, %v1253
        %v1316 = vpack.c.b16 %v1256, %v1254
        %v1317 = vpack.c.b16 %v1259, %v1257
        %v1318 = vpack.c.b16 %v1260, %v1258
        %v1319 = vpack.c.b16 %v1263, %v1261
        %v1320 = vpack.c.b16 %v1264, %v1262
        %v1321 = vpack.c.b16 %v1267, %v1265
        %v1322 = vpack.c.b16 %v1268, %v1266
        %v1323 = vpack.c.b16 %v1271, %v1269
        %v1324 = vpack.c.b16 %v1272, %v1270
        %v1325 = vpack.c.b16 %v1275, %v1273
        %v1326 = vpack.c.b16 %v1276, %v1274
        %v1327 = vpack.c.b16 %v1279, %v1277
        %v1328 = vpack.c.b16 %v1280, %v1278
        %v1329 = vpack.c.b16 %v1283, %v1281
        %v1330 = vpack.c.b16 %v1284, %v1282
        %v1331 = vpack.c.b16 %v1287, %v1285
        %v1332 = vpack.c.b16 %v1288, %v1286
        %v1333 = vpack.c.b16 %v1291, %v1289
        %v1334 = vpack.c.b16 %v1292, %v1290
        %v1335 = vpack.c.b16 %v1295, %v1293
        %v1336 = vpack.c.b16 %v1296, %v1294
        %v1337 = vpack.c.b16 %v1299, %v1297
        %v1338 = vpack.c.b16 %v1300, %v1298
        %v1339 = vpack.c.b16 %v1303, %v1301
        %v1340 = vpack.c.b16 %v1304, %v1302
        %v1341 = vpack.c.b16 %v1307, %v1305
        %v1342 = vpack.c.b16 %v1308, %v1306
        %v1343 = vpack.c.b16 %v1311, %v1309
        %v1344 = vpack.c.b16 %v1312, %v1310
        %1377 = vmatpush.bf16.msra.mxu0 %v1327
        %1378 = vmatpush.bf16.msra.mxu0 %v1325
        %1379 = vmatpush.bf16.msra.mxu0 %v1323
        %1380 = vmatpush.bf16.msra.mxu0 %v1321
        %1381 = vmatpush.bf16.msra.mxu0 %v1319
        %1382 = vmatpush.bf16.msra.mxu0 %v1317
        %1383 = vmatpush.bf16.msra.mxu0 %v1315
        %1384 = vmatpush.bf16.msra.mxu0 %v1313
        %1385 = vmatmul.bf16.gmra.mxu0 %v1177
        %v1386 = vpop.f32.mrf.mxu0
        %v1387 = vadd.f32 %v1213, %v1386
        %v1388 = vpop.f32.mrf.mxu0
        %1389 = vdwg.mxu0
        %1390 = vmatpush.bf16.msra.mxu0 %v1343
        %1391 = vmatpush.bf16.msra.mxu0 %v1341
        %1392 = vmatpush.bf16.msra.mxu0 %v1339
        %1393 = vmatpush.bf16.msra.mxu0 %v1337
        %1394 = vmatpush.bf16.msra.mxu0 %v1335
        %1395 = vmatpush.bf16.msra.mxu0 %v1333
        %1396 = vmatpush.bf16.msra.mxu0 %v1331
        %1397 = vmatpush.bf16.msra.mxu0 %v1329
        %1398 = vmatmul.bf16.gmra.mxu0 %v1178
        %v1399 = vpop.f32.mrf.mxu0
        %v1400 = vadd.f32 %v1387, %v1399
        %v1401 = vpop.f32.mrf.mxu0
        %1402 = vdwg.mxu0
        %1403 = vmatpush.bf16.msra.mxu0 %v1328
        %1404 = vmatpush.bf16.msra.mxu0 %v1326
        %1405 = vmatpush.bf16.msra.mxu0 %v1324
        %1406 = vmatpush.bf16.msra.mxu0 %v1322
        %1407 = vmatpush.bf16.msra.mxu0 %v1320
        %1408 = vmatpush.bf16.msra.mxu0 %v1318
        %1409 = vmatpush.bf16.msra.mxu0 %v1316
        %1410 = vmatpush.bf16.msra.mxu0 %v1314
        %1411 = vmatmul.bf16.gmra.mxu0 %v1177
        %v1412 = vpop.f32.mrf.mxu0
        %v1413 = vadd.f32 %v1214, %v1412
        %v1414 = vpop.f32.mrf.mxu0
        %1415 = vdwg.mxu0
        %1416 = vmatpush.bf16.msra.mxu0 %v1344
        %1417 = vmatpush.bf16.msra.mxu0 %v1342
        %1418 = vmatpush.bf16.msra.mxu0 %v1340
        %1419 = vmatpush.bf16.msra.mxu0 %v1338
        %1420 = vmatpush.bf16.msra.mxu0 %v1336
        %1421 = vmatpush.bf16.msra.mxu0 %v1334
        %1422 = vmatpush.bf16.msra.mxu0 %v1332
        %1423 = vmatpush.bf16.msra.mxu0 %v1330
        %1424 = vmatmul.bf16.gmra.mxu0 %v1178
        %v1425 = vpop.f32.mrf.mxu0
        %v1426 = vadd.f32 %v1413, %v1425
        %v1427 = vpop.f32.mrf.mxu0
        %1428 = vdwg.mxu0
        %v1429 = vld [vmem:[%s14] sm:$0x3]
        %v1430 = vld [vmem:[%s15] sm:$0x3]
        %v1431 = vmul.f32 %v1400, %v749
        %v1432 = vmul.f32 %v1426, %v749
        %v1433 = vrot.slane %v1431, 4
        %v1434 = vadd.f32 %v1431, %v1433
        %v1435 = vrot.slane %v1434, 2
        %v1436 = vadd.f32 %v1434, %v1435
        %v1437 = vrot.slane %v1436, 1
        %v1438 = vadd.f32 %v1436, %v1437
        %v1439 = vrot.slane %v1432, 4
        %v1440 = vadd.f32 %v1432, %v1439
        %v1441 = vrot.slane %v1440, 2
        %v1442 = vadd.f32 %v1440, %v1441
        %v1443 = vrot.slane %v1442, 1
        %v1444 = vadd.f32 %v1442, %v1443
        %v1445 = vmul.f32 %v1438, %v1114
        %v1446 = vmul.f32 %v1444, %v1114
        %v1447 = vsub.f32 %v1400, %v1445
        %v1448 = vsub.f32 %v1426, %v1446
        %v1449 = vmul.f32 %v1447, %v749
        %v1450 = vmul.f32 %v1448, %v749
        %v1451 = vmul.f32 %v1449, %v1449
        %v1452 = vmul.f32 %v1450, %v1450
        %v1453 = vrot.slane %v1451, 4
        %v1454 = vadd.f32 %v1451, %v1453
        %v1455 = vrot.slane %v1454, 2
        %v1456 = vadd.f32 %v1454, %v1455
        %v1457 = vrot.slane %v1456, 1
        %v1458 = vadd.f32 %v1456, %v1457
        %v1459 = vrot.slane %v1452, 4
        %v1460 = vadd.f32 %v1452, %v1459
        %v1461 = vrot.slane %v1460, 2
        %v1462 = vadd.f32 %v1460, %v1461
        %v1463 = vrot.slane %v1462, 1
        %v1464 = vadd.f32 %v1462, %v1463
        %v1465 = vmul.f32 %v1458, %v1114
        %v1466 = vmul.f32 %v1464, %v1114
        %v1467 = vadd.f32 %v1465, 1e-05
        %v1468 = vadd.f32 %v1466, 1e-05
        %v1469 = vrsqrt.pop %v1467
        %v1470 = vmul.f32 %v1469, %v1467
        %v1471 = vmul.f32 %v1470, %v1469
        %v1472 = vmul.f32 0.5, %v1471
        %v1473 = vsub.f32 1.5, %v1472
        %v1474 = vmul.f32 %v1469, %v1473
        %vm1475 = vweird.f32 %v1467
        %vm1476 = vweird.f32 %v1469
        %vm1477 = vmor %vm1475, %vm1476
        %v1478 = vsel %vm1477, %v1469, %v1474
        %v1479 = vrsqrt.pop %v1468
        %v1480 = vmul.f32 %v1479, %v1468
        %v1481 = vmul.f32 %v1480, %v1479
        %v1482 = vmul.f32 0.5, %v1481
        %v1483 = vsub.f32 1.5, %v1482
        %v1484 = vmul.f32 %v1479, %v1483
        %vm1485 = vweird.f32 %v1468
        %vm1486 = vweird.f32 %v1479
        %vm1487 = vmor %vm1485, %vm1486
        %v1488 = vsel %vm1487, %v1479, %v1484
        %v1489 = vmul.f32 %v1447, %v1478
        %v1490 = vmul.f32 %v1448, %v1488
        %v1492 = vperm.slane %v1429, 0
        %v1493 = vperm.slane %v1429, 1
        %v1496 = vmul.f32 %v1489, %v1492
        %v1497 = vmul.f32 %v1490, %v1493
        %v1499 = vperm.slane %v1430, 0
        %v1500 = vperm.slane %v1430, 1
        %v1503 = vadd.f32 %v1496, %v1499
        %v1504 = vadd.f32 %v1497, %v1500
        %v1505 = vmax.f32 %v1503, 0.0
        %v1506 = vmax.f32 %v1504, 0.0
        %v1507 = vpack.c.bf16 %v1505, %v1505
        %v1508 = vpack.c.bf16 %v1506, %v1506
        %v1509 = vld [vmem:[#allocation19] sm:$0xf]
        %v1510 = vld [vmem:[#allocation19 + $0x4] sm:$0xf]
        %v1511 = vld [vmem:[#allocation19 + $0x8] sm:$0xf]
        %v1512 = vld [vmem:[#allocation19 + $0xc] sm:$0xf]
        %v1513 = vld [vmem:[#allocation19 + $0x10] sm:$0xf]
        %v1514 = vld [vmem:[#allocation19 + $0x14] sm:$0xf]
        %v1515 = vld [vmem:[#allocation19 + $0x18] sm:$0xf]
        %v1516 = vld [vmem:[#allocation19 + $0x1c] sm:$0xf]
        %v1517 = vld [vmem:[#allocation19 + $0x20] sm:$0xf]
        %v1518 = vld [vmem:[#allocation19 + $0x24] sm:$0xf]
        %v1519 = vld [vmem:[#allocation19 + $0x28] sm:$0xf]
        %v1520 = vld [vmem:[#allocation19 + $0x2c] sm:$0xf]
        %v1521 = vld [vmem:[#allocation19 + $0x30] sm:$0xf]
        %v1522 = vld [vmem:[#allocation19 + $0x34] sm:$0xf]
        %v1523 = vld [vmem:[#allocation19 + $0x38] sm:$0xf]
        %v1524 = vld [vmem:[#allocation19 + $0x3c] sm:$0xf]
        %v1525 = vld [vmem:[#allocation19 + $0x40] sm:$0xf]
        %v1526 = vld [vmem:[#allocation19 + $0x44] sm:$0xf]
        %v1527 = vld [vmem:[#allocation19 + $0x48] sm:$0xf]
        %v1528 = vld [vmem:[#allocation19 + $0x4c] sm:$0xf]
        %v1529 = vld [vmem:[#allocation19 + $0x50] sm:$0xf]
        %v1530 = vld [vmem:[#allocation19 + $0x54] sm:$0xf]
        %v1531 = vld [vmem:[#allocation19 + $0x58] sm:$0xf]
        %v1532 = vld [vmem:[#allocation19 + $0x5c] sm:$0xf]
        %v1533 = vld [vmem:[#allocation19 + $0x60] sm:$0xf]
        %v1534 = vld [vmem:[#allocation19 + $0x64] sm:$0xf]
        %v1535 = vld [vmem:[#allocation19 + $0x68] sm:$0xf]
        %v1536 = vld [vmem:[#allocation19 + $0x6c] sm:$0xf]
        %v1537 = vld [vmem:[#allocation19 + $0x70] sm:$0xf]
        %v1538 = vld [vmem:[#allocation19 + $0x74] sm:$0xf]
        %v1539 = vld [vmem:[#allocation19 + $0x78] sm:$0xf]
        %v1540 = vld [vmem:[#allocation19 + $0x7c] sm:$0xf]
        %v1541 = vld [vmem:[%s17] sm:$0x1]
        %v1543 = vperm.slane %v1541, 0
        %v1577 = vunpack.c.l.b16 %v1509
        %v1578 = vunpack.c.l.b16 %v1510
        %v1579 = vunpack.c.l.b16 %v1511
        %v1580 = vunpack.c.l.b16 %v1512
        %v1581 = vunpack.c.l.b16 %v1513
        %v1582 = vunpack.c.l.b16 %v1514
        %v1583 = vunpack.c.l.b16 %v1515
        %v1584 = vunpack.c.l.b16 %v1516
        %v1585 = vunpack.c.l.b16 %v1517
        %v1586 = vunpack.c.l.b16 %v1518
        %v1587 = vunpack.c.l.b16 %v1519
        %v1588 = vunpack.c.l.b16 %v1520
        %v1589 = vunpack.c.l.b16 %v1521
        %v1590 = vunpack.c.l.b16 %v1522
        %v1591 = vunpack.c.l.b16 %v1523
        %v1592 = vunpack.c.l.b16 %v1524
        %v1593 = vunpack.c.l.b16 %v1525
        %v1594 = vunpack.c.l.b16 %v1526
        %v1595 = vunpack.c.l.b16 %v1527
        %v1596 = vunpack.c.l.b16 %v1528
        %v1597 = vunpack.c.l.b16 %v1529
        %v1598 = vunpack.c.l.b16 %v1530
        %v1599 = vunpack.c.l.b16 %v1531
        %v1600 = vunpack.c.l.b16 %v1532
        %v1601 = vunpack.c.l.b16 %v1533
        %v1602 = vunpack.c.l.b16 %v1534
        %v1603 = vunpack.c.l.b16 %v1535
        %v1604 = vunpack.c.l.b16 %v1536
        %v1605 = vunpack.c.l.b16 %v1537
        %v1606 = vunpack.c.l.b16 %v1538
        %v1607 = vunpack.c.l.b16 %v1539
        %v1608 = vunpack.c.l.b16 %v1540
        %v1609 = vpack.c.b16 %v1578, %v1577
        %v1610 = vpack.c.b16 %v1580, %v1579
        %v1611 = vpack.c.b16 %v1582, %v1581
        %v1612 = vpack.c.b16 %v1584, %v1583
        %v1613 = vpack.c.b16 %v1586, %v1585
        %v1614 = vpack.c.b16 %v1588, %v1587
        %v1615 = vpack.c.b16 %v1590, %v1589
        %v1616 = vpack.c.b16 %v1592, %v1591
        %v1617 = vpack.c.b16 %v1594, %v1593
        %v1618 = vpack.c.b16 %v1596, %v1595
        %v1619 = vpack.c.b16 %v1598, %v1597
        %v1620 = vpack.c.b16 %v1600, %v1599
        %v1621 = vpack.c.b16 %v1602, %v1601
        %v1622 = vpack.c.b16 %v1604, %v1603
        %v1623 = vpack.c.b16 %v1606, %v1605
        %v1624 = vpack.c.b16 %v1608, %v1607
        %1641 = vmatpush.bf16.msra.mxu0 %v1616
        %1642 = vmatpush.bf16.msra.mxu0 %v1615
        %1643 = vmatpush.bf16.msra.mxu0 %v1614
        %1644 = vmatpush.bf16.msra.mxu0 %v1613
        %1645 = vmatpush.bf16.msra.mxu0 %v1612
        %1646 = vmatpush.bf16.msra.mxu0 %v1611
        %1647 = vmatpush.bf16.msra.mxu0 %v1610
        %1648 = vmatpush.bf16.msra.mxu0 %v1609
        %1649 = vmatmul.bf16.gmra.mxu0 %v1507
        %v1650 = vpop.f32.mrf.mxu0
        %v1651 = vadd.f32 %v1543, %v1650
        %v1652 = vpop.f32.mrf.mxu0
        %1653 = vdwg.mxu0
        %1654 = vmatpush.bf16.msra.mxu0 %v1624
        %1655 = vmatpush.bf16.msra.mxu0 %v1623
        %1656 = vmatpush.bf16.msra.mxu0 %v1622
        %1657 = vmatpush.bf16.msra.mxu0 %v1621
        %1658 = vmatpush.bf16.msra.mxu0 %v1620
        %1659 = vmatpush.bf16.msra.mxu0 %v1619
        %1660 = vmatpush.bf16.msra.mxu0 %v1618
        %1661 = vmatpush.bf16.msra.mxu0 %v1617
        %1662 = vmatmul.bf16.gmra.mxu0 %v1508
        %v1663 = vpop.f32.mrf.mxu0
        %v1664 = vadd.f32 %v1651, %v1663
        %v1665 = vpop.f32.mrf.mxu0
        %1666 = vdwg.mxu0
        %1667 = vst [vmem:[%s741] sm:$0xff] %v1664
        %s1668 = sand.u32 %s425, 1
        %s1669 = scalar_lea.sflag [#allocation6], %s1668
        %s1670 = sand.u32 %s425, 1
        %s1671 = smul.addr %s1670, 8
        %s1672 = scalar_lea.vmem [#allocation21], %s1671
        // Predicated region
        $region129: #{tpu_custom_call.1} parent=87 // pred_check
          %p1673 = pneg %p435
        $region130: #{tpu_custom_call.1} parent=87 // pred_check_branch
          %1675 = sbr.rel (%p1673) target = $region132
        $region131: #{tpu_custom_call.1} parent=87 // pred_region
          %1677 = vsyncadd %s1669, 0
          %s1678 = smul.addr %s50, 8
          %s1679 = scalar_lea.hbm %s18, %s1678
          %s1681 = sshll.u32 %s1672, 4
          %s1682 = int_to_ptr.vmem [resolvable:$true] %s1681
          %s1683 = sshll.u32 %s1679, 4
          %s1684 = int_to_ptr.hbm [resolvable:$true] %s1683
          %1686 = dma.vmem_to_hbm [thread:$0]  %s1682, 128, %s1684, %s1669
        $region132: #{tpu_custom_call.1} parent=87 // pred_fallthru
          _
      $region88: #{tpu_custom_call.1} parent=5 // pred_fallthru
        _
      %p1687 = scmp.le.s32.totalorder 2, %s45
      // Predicated region
      $region133: #{tpu_custom_call.1} parent=5 // pred_check
        %p1688 = pneg %p1687
      $region134: #{tpu_custom_call.1} parent=5 // pred_check_branch
        %1690 = sbr.rel (%p1688) target = $region136
      $region135: #{tpu_custom_call.1} parent=5 // pred_region
        %s1691 = ssub.s32 %s45, 2
        // Predicated region
        $region137: #{tpu_custom_call.1} parent=135 // pred_check
          %p1692 = pneg %p441
        $region138: #{tpu_custom_call.1} parent=135 // pred_check_branch
          %1694 = sbr.rel (%p1692) target = $region140
        $region139: #{tpu_custom_call.1} parent=135 // pred_region
          %s1695 = sand.u32 %s426, 1
          %s1696 = scalar_lea.sflag [#allocation6], %s1695
          %s1697 = sand.u32 %s426, 1
          %s1698 = smul.addr %s1697, 8
          %s1699 = scalar_lea.vmem [#allocation21], %s1698
          %1701 = dma.done %s1696, 128
        $region140: #{tpu_custom_call.1} parent=135 // pred_fallthru
          _
      $region136: #{tpu_custom_call.1} parent=5 // pred_fallthru
        _
    $region6: #{tpu_custom_call.1} parent=1 // loop_footer
      %s49 = sadd.s32 1, %s45
    $region7: #{tpu_custom_call.1} parent=1 // loop_footer_branch
      %44 = sbr.rel target = $region3
    $region8: #{tpu_custom_call.1} parent=1 // loop_exit
      _
    %1702 = vsyncpa [#allocation5], 1
    %s1703 = scalar_lea.sflag [#allocation5], 1
    %1704 = vsyncpa %s1703, 1
    %1705 = vsyncpa [#allocation8], 1
    %s1706 = scalar_lea.sflag [#allocation8], 1
    %1707 = vsyncpa %s1706, 1
    %1708 = vsyncpa [#allocation11], 1
    %1709 = vsyncpa [#allocation14], 1
    %1710 = vsyncpa [#allocation17], 1
    %1711 = vsyncpa [#allocation20], 1
    %1712 = vsyncpa [#allocation6], 1
    %s1713 = scalar_lea.sflag [#allocation6], 1
    %1714 = vsyncpa %s1713, 1

</llo_original>
